<compile_context>
chip_gen: v6e
topology: v6e:2x2x1
jax: 0.10.0
libtpu: 0.0.40
codegen_flags: <defaults>
</compile_context>

<pallas_src>
import functools

import jax
import jax.numpy as jnp
from jax.experimental import pallas as pl
from jax.experimental.pallas import tpu as pltpu

OUT_PAD = 128  # lane-dense output width; wrapper slices back to num_outputs


# ----------------------------------------------------------------------------
# Fused kernel: one grid step = one row tile (flattened timesteps*batch rows).
# ----------------------------------------------------------------------------
def gcl_dual_kernel(x_ref, k_ref,
                    wc_ref, bc_ref,
                    ws_ref, rd_ref,
                    w1_ref, b1_ref,
                    w2_ref, b2_ref,
                    wcomb_ref, bcomb_ref,
                    wfc_ref, bfc_ref,
                    o_ref, *, n_heads, mem_rows):
    f32 = jnp.float32

    # ---- controller stand-in: tanh-linear -----------------------------------
    # TODO(synk): the real controller (e.g. LSTMController) is an external
    # module not defined in src/gcl.py; deterministic tanh-linear stand-in.
    ctrl = jnp.tanh(
        jnp.dot(x_ref[...], wc_ref[...], preferred_element_type=f32) + bc_ref[...])

    # ---- all R+1 content-addressing heads: ONE score dot --------------------
    # ws = [wk_h[0]@mem_h.T | ... | wk_h[R-1]@mem_h.T | wk_o@mem_o.T]
    scores = jnp.dot(k_ref[...], ws_ref[...],
                     preferred_element_type=f32)                  # (rows, (R+1)*N)

    # per-head softmax over its N-wide segment (static unroll over R+1 heads)
    segs = []
    for h in range(n_heads):
        s = scores[:, h * mem_rows:(h + 1) * mem_rows]
        s = s - jnp.max(s, axis=-1, keepdims=True)
        e = jnp.exp(s)
        inv = pl.reciprocal(jnp.sum(e, axis=-1, keepdims=True), approx=True)
        segs.append(e * inv)
    w_all = jnp.concatenate(segs, axis=-1)                        # (rows, (R+1)*N)

    # ---- ONE read dot -> [mean(context) | out_read] directly ----------------
    # read_mat hidden blocks carry the 1/R mean fold; output block is mem_o.
    cat = jnp.dot(w_all, rd_ref[...], preferred_element_type=f32)  # (rows, M0+M1)

    # ---- reader MLP + combiner (fused ReLUs) ---------------------------------
    h1 = jnp.maximum(
        jnp.dot(cat, w1_ref[...], preferred_element_type=f32) + b1_ref[...], 0.0)
    h2 = jnp.maximum(
        jnp.dot(h1, w2_ref[...], preferred_element_type=f32) + b2_ref[...], 0.0)
    rv = jnp.maximum(
        jnp.dot(h2, wcomb_ref[...], preferred_element_type=f32) + bcomb_ref[...], 0.0)

    # ---- fc on [ctrl | rv]; lane-dense (128-wide) store ----------------------
    inp2 = jnp.concatenate([ctrl, rv], axis=-1)                   # (rows, C+D)
    o = jnp.dot(inp2, wfc_ref[...], preferred_element_type=f32) + bfc_ref[...]
    o_ref[...] = jnp.maximum(o, 0.0).astype(o_ref.dtype)


# ----------------------------------------------------------------------------
# Wrapper
# ----------------------------------------------------------------------------
def _derive_head_mats(params):
    """Fold key projections into score weights and build the block read matrix
    from the CURRENT memories (never stale w.r.t. external write-head updates)."""
    mem_h, mem_o = params["mem_h"], params["mem_o"]
    wk_h, wk_o = params["wk_h"], params["wk_o"]
    R = wk_h.shape[0]
    N, M0 = mem_h.shape
    M1 = mem_o.shape[1]
    # (M0, (R+1)*N): scores for every head from one dot with k.
    ws_all = jnp.concatenate(
        [wk_h[i] @ mem_h.T for i in range(R)] + [wk_o @ mem_o.T], axis=1)
    # ((R+1)*N, M0+M1) block-stacked read matrix; 1/R mean fold on hidden blocks.
    read_mat = jnp.zeros(((R + 1) * N, M0 + M1), jnp.float32)
    for i in range(R):
        read_mat = read_mat.at[i * N:(i + 1) * N, :M0].set(mem_h / R)
    read_mat = read_mat.at[R * N:, M0:].set(mem_o)
    return ws_all, read_mat


def gcl_dual_forward_seq(k_seq, x_seq, params, *, row_tile=None):
    """Fused forward over a (T, B, ...) sequence.

    Steps are independent in this kernel (write-head memory updates and head
    states are external modules), so T*B rows are flattened and gridded; all
    weights stay VMEM-resident across grid steps via constant index_maps.
    """
    T, B = x_seq.shape[:2]
    rows = T * B
    M0 = k_seq.shape[-1]
    num_inputs = x_seq.shape[-1]
    num_outputs = params["wfc"].shape[-1]

    if row_tile is None:
        row_tile = min(rows, 256)          # at >=128-row tiles consider bf16
    row_tile = max(8, -(-row_tile // 8) * 8)
    rows_pad = -(-rows // row_tile) * row_tile

    x2 = x_seq.reshape(rows, num_inputs)
    k2 = k_seq.reshape(rows, M0)
    if rows_pad != rows:
        x2 = jnp.pad(x2, ((0, rows_pad - rows), (0, 0)))
        k2 = jnp.pad(k2, ((0, rows_pad - rows), (0, 0)))

    ws_all, read_mat = _derive_head_mats(params)
    R = params["wk_h"].shape[0]
    N = params["mem_h"].shape[0]

    weights = (params["wc"], params["bc"],
               ws_all, read_mat,
               params["w1"], params["b1"],
               params["w2"], params["b2"],
               params["wcomb"], params["bcomb"],
               params["wfc_pad"], params["bfc_pad"])

    def resident(a):                       # full-array block, constant index_map
        return pl.BlockSpec(a.shape, lambda i: (0, 0))

    in_specs = ([pl.BlockSpec((row_tile, num_inputs), lambda i: (i, 0)),
                 pl.BlockSpec((row_tile, M0), lambda i: (i, 0))]
                + [resident(w) for w in weights])

    o_pad = pl.pallas_call(
        functools.partial(gcl_dual_kernel, n_heads=R + 1, mem_rows=N),
        out_shape=jax.ShapeDtypeStruct((rows_pad, OUT_PAD), jnp.float32),
        grid=(rows_pad // row_tile,),
        in_specs=in_specs,
        out_specs=pl.BlockSpec((row_tile, OUT_PAD), lambda i: (i, 0)),
        compiler_params=pltpu.CompilerParams(
            dimension_semantics=("parallel",)),   # v7x: two TCs split the grid
    )(x2, k2, *weights)

    o = o_pad[:rows, :num_outputs].reshape(T, B, num_outputs)
    # TODO(synk): per-head states / write-head memory updates / LSTM controller
    # state are external modules (not in src/gcl.py); state is not reproduced.
    state = None
    return o, state


def gcl_dual_forward(k, x, params):
    """Single-step forward matching GCLDual.forward's per-call signature."""
    o_seq, state = gcl_dual_forward_seq(k[None], x[None], params)
    return o_seq[0], state


# ----------------------------------------------------------------------------
# Parameters (deterministic stand-ins for external sub-modules included)
# ----------------------------------------------------------------------------
def init_params(key, *, num_inputs, num_outputs, controller_size, N, M0, M1, R):
    D = M0 + M1
    ks = jax.random.split(key, 14)

    def xavier(kk, shape):
        fan_in, fan_out = shape
        lim = jnp.sqrt(6.0 / (fan_in + fan_out))
        return jax.random.uniform(kk, shape, jnp.float32, -lim, lim)

    p = {}
    # controller stand-in (external module in the original code)
    p["wc"] = xavier(ks[0], (num_inputs, controller_size))
    p["bc"] = jnp.zeros((1, controller_size), jnp.float32)
    # memories + per-head key projections (stand-in content-addressing heads)
    p["mem_h"] = 0.1 * jax.random.normal(ks[1], (N, M0), jnp.float32)
    p["mem_o"] = 0.1 * jax.random.normal(ks[2], (N, M1), jnp.float32)
    p["wk_h"] = jax.random.normal(ks[3], (R, M0, M0), jnp.float32) / jnp.sqrt(M0)
    p["wk_o"] = jax.random.normal(ks[4], (M0, M1), jnp.float32) / jnp.sqrt(M0)
    # reader: Linear(D,D)->ReLU->Linear(D,D)->ReLU
    p["w1"] = xavier(ks[5], (D, D))
    p["b1"] = 0.01 * jax.random.normal(ks[6], (1, D), jnp.float32)
    p["w2"] = xavier(ks[7], (D, D))
    p["b2"] = 0.01 * jax.random.normal(ks[8], (1, D), jnp.float32)
    # combiner: Linear(D*CANDIDATES, D), CANDIDATES = 1
    p["wcomb"] = xavier(ks[9], (D, D))
    p["bcomb"] = 0.01 * jax.random.normal(ks[10], (1, D), jnp.float32)
    # fc: Linear(controller_size + D, num_outputs), zero-padded to 128 lanes
    wfc = xavier(ks[11], (controller_size + D, num_outputs))
    bfc = 0.01 * jax.random.normal(ks[12], (1, num_outputs), jnp.float32)
    p["wfc"], p["bfc"] = wfc, bfc
    p["wfc_pad"] = jnp.zeros((controller_size + D, OUT_PAD), jnp.float32
                             ).at[:, :num_outputs].set(wfc)
    p["bfc_pad"] = jnp.zeros((1, OUT_PAD), jnp.float32).at[:, :num_outputs].set(bfc)
    return p


# Pure-JAX reference of the forward (unfolded math, for correctness check).
def reference_forward_rows(k, x, p):
    ctrl = jnp.tanh(x @ p["wc"] + p["bc"])

    def head(wk, mem):
        sc = (k @ wk) @ mem.T
        w = jax.nn.softmax(sc, axis=-1)
        return w @ mem

    R = p["wk_h"].shape[0]
    reads = [head(p["wk_h"][i], p["mem_h"]) for i in range(R)]
    out_read = head(p["wk_o"], p["mem_o"])
    context = jnp.stack(reads, 0).mean(0)
    cat = jnp.concatenate([context, out_read], axis=-1)
    h = jax.nn.relu(cat @ p["w1"] + p["b1"])
    h = jax.nn.relu(h @ p["w2"] + p["b2"])
    rv = jax.nn.relu(h @ p["wcomb"] + p["bcomb"])
    inp2 = jnp.concatenate([ctrl, rv], axis=-1)
    return jax.nn.relu(inp2 @ p["wfc"] + p["bfc"])


if __name__ == "__main__":
    # Small shapes consistent with the module; T*B = 128 rows exercised as a
    # 4-step grid of 32-row tiles with VMEM-resident weights.
    T, B = 16, 8
    num_inputs = 16
    num_outputs = 16
    controller_size = 32
    N = 8            # memory rows
    M0 = 32          # memory_hidden width (== key dim)
    M1 = 32          # memory_output width
    R = 2            # number of non-output read heads

    key = jax.random.PRNGKey(0)
    kp, kk, kx = jax.random.split(key, 3)
    params = init_params(kp, num_inputs=num_inputs, num_outputs=num_outputs,
                         controller_size=controller_size, N=N, M0=M0, M1=M1, R=R)

    k_seq = jax.random.normal(kk, (T, B, M0), jnp.float32)           # key vectors
    x_seq = jax.random.normal(kx, (T, B, num_inputs), jnp.float32)   # input vectors

    o_seq, _ = gcl_dual_forward_seq(k_seq, x_seq, params, row_tile=32)
    o_seq = jax.block_until_ready(o_seq)
    assert o_seq.shape == (T, B, num_outputs)

    ref = reference_forward_rows(k_seq.reshape(T * B, M0),
                                 x_seq.reshape(T * B, num_inputs),
                                 params).reshape(T, B, num_outputs)
    # approx EUP reciprocal in the softmax -> slightly relaxed tolerance
    max_err = float(jnp.max(jnp.abs(o_seq - ref)))
    assert jnp.allclose(o_seq, ref, atol=2e-3, rtol=2e-3), max_err

    # single-step path matching the module's per-call forward signature
    o1, _ = gcl_dual_forward(k_seq[0], x_seq[0], params)
    o1 = jax.block_until_ready(o1)
    assert o1.shape == (B, num_outputs)
    assert jnp.allclose(o1, ref[0], atol=2e-3, rtol=2e-3)

    print("KERNEL_OK")
</pallas_src>

<mosaic_0001>
module attributes {stable_mosaic.version = 11 : i64} {
  func.func @gcl_dual_kernel(%arg0: i32, %arg1: memref<32x16xf32, #tpu.memory_space<vmem>>, %arg2: memref<32x32xf32, #tpu.memory_space<vmem>>, %arg3: memref<16x32xf32, #tpu.memory_space<vmem>>, %arg4: memref<1x32xf32, #tpu.memory_space<vmem>>, %arg5: memref<32x24xf32, #tpu.memory_space<vmem>>, %arg6: memref<24x64xf32, #tpu.memory_space<vmem>>, %arg7: memref<64x64xf32, #tpu.memory_space<vmem>>, %arg8: memref<1x64xf32, #tpu.memory_space<vmem>>, %arg9: memref<64x64xf32, #tpu.memory_space<vmem>>, %arg10: memref<1x64xf32, #tpu.memory_space<vmem>>, %arg11: memref<64x64xf32, #tpu.memory_space<vmem>>, %arg12: memref<1x64xf32, #tpu.memory_space<vmem>>, %arg13: memref<96x128xf32, #tpu.memory_space<vmem>>, %arg14: memref<1x128xf32, #tpu.memory_space<vmem>>, %arg15: memref<32x128xf32, #tpu.memory_space<vmem>>) attributes {dimension_semantics = [#tpu.dimension_semantics<parallel>], iteration_bounds = array<i64: 4>, scalar_prefetch = 0 : i64, scratch_operands = 0 : i64, tpu.core_type = #tpu.core_type<tc>, window_params = [{transform_indices = @transform_0, window_bounds = array<i64: 32, 16>}, {transform_indices = @transform_1, window_bounds = array<i64: 32, 32>}, {pipeline_mode = #tpu.pipeline_mode<synchronous>, transform_indices = @transform_2, window_bounds = array<i64: 16, 32>}, {pipeline_mode = #tpu.pipeline_mode<synchronous>, transform_indices = @transform_3, window_bounds = array<i64: 1, 32>}, {pipeline_mode = #tpu.pipeline_mode<synchronous>, transform_indices = @transform_4, window_bounds = array<i64: 32, 24>}, {pipeline_mode = #tpu.pipeline_mode<synchronous>, transform_indices = @transform_5, window_bounds = array<i64: 24, 64>}, {pipeline_mode = #tpu.pipeline_mode<synchronous>, transform_indices = @transform_6, window_bounds = array<i64: 64, 64>}, {pipeline_mode = #tpu.pipeline_mode<synchronous>, transform_indices = @transform_7, window_bounds = array<i64: 1, 64>}, {pipeline_mode = #tpu.pipeline_mode<synchronous>, transform_indices = @transform_8, window_bounds = array<i64: 64, 64>}, {pipeline_mode = #tpu.pipeline_mode<synchronous>, transform_indices = @transform_9, window_bounds = array<i64: 1, 64>}, {pipeline_mode = #tpu.pipeline_mode<synchronous>, transform_indices = @transform_10, window_bounds = array<i64: 64, 64>}, {pipeline_mode = #tpu.pipeline_mode<synchronous>, transform_indices = @transform_11, window_bounds = array<i64: 1, 64>}, {pipeline_mode = #tpu.pipeline_mode<synchronous>, transform_indices = @transform_12, window_bounds = array<i64: 96, 128>}, {pipeline_mode = #tpu.pipeline_mode<synchronous>, transform_indices = @transform_13, window_bounds = array<i64: 1, 128>}, {transform_indices = @transform_14, window_bounds = array<i64: 32, 128>}]} {
    %c0 = arith.constant 0 : index
    %c0_0 = arith.constant 0 : index
    %0 = vector.load %arg1[%c0, %c0_0] : memref<32x16xf32, #tpu.memory_space<vmem>>, vector<32x16xf32>
    %c0_1 = arith.constant 0 : index
    %c0_2 = arith.constant 0 : index
    %1 = vector.load %arg3[%c0_1, %c0_2] : memref<16x32xf32, #tpu.memory_space<vmem>>, vector<16x32xf32>
    %cst = arith.constant dense<0.000000e+00> : vector<32x32xf32>
    %2 = tpu.matmul %0, %1, %cst {dimension_numbers = #tpu.dot_dimension_numbers<[1], [0], [0], [1], [0, 0, 1, 1], [], []>} : vector<32x16xf32>, vector<16x32xf32>, vector<32x32xf32> -> vector<32x32xf32>
    %c0_3 = arith.constant 0 : index
    %c0_4 = arith.constant 0 : index
    %3 = vector.load %arg4[%c0_3, %c0_4] : memref<1x32xf32, #tpu.memory_space<vmem>>, vector<1x32xf32>
    %4 = vector.broadcast %3 : vector<1x32xf32> to vector<32x32xf32>
    %5 = arith.addf %2, %4 : vector<32x32xf32>
    %6 = math.tanh %5 : vector<32x32xf32>
    %c0_5 = arith.constant 0 : index
    %c0_6 = arith.constant 0 : index
    %7 = vector.load %arg2[%c0_5, %c0_6] : memref<32x32xf32, #tpu.memory_space<vmem>>, vector<32x32xf32>
    %c0_7 = arith.constant 0 : index
    %c0_8 = arith.constant 0 : index
    %8 = vector.load %arg5[%c0_7, %c0_8] : memref<32x24xf32, #tpu.memory_space<vmem>>, vector<32x24xf32>
    %cst_9 = arith.constant dense<0.000000e+00> : vector<32x24xf32>
    %9 = tpu.matmul %7, %8, %cst_9 {dimension_numbers = #tpu.dot_dimension_numbers<[1], [0], [0], [1], [0, 0, 1, 1], [], []>} : vector<32x32xf32>, vector<32x24xf32>, vector<32x24xf32> -> vector<32x24xf32>
    %10 = vector.extract_strided_slice %9 {offsets = [0, 0], sizes = [32, 8], strides = [1, 1]} : vector<32x24xf32> to vector<32x8xf32>
    %cst_10 = arith.constant dense<0xFF800000> : vector<32xf32>
    %11 = vector.multi_reduction <maximumf>, %10, %cst_10 [1] : vector<32x8xf32> to vector<32xf32>
    %12 = vector.shape_cast %11 : vector<32xf32> to vector<32x1xf32>
    %13 = vector.broadcast %12 : vector<32x1xf32> to vector<32x8xf32>
    %14 = arith.subf %10, %13 : vector<32x8xf32>
    %15 = math.exp %14 : vector<32x8xf32>
    %cst_11 = arith.constant dense<0.000000e+00> : vector<32xf32>
    %16 = vector.multi_reduction <add>, %15, %cst_11 [1] : vector<32x8xf32> to vector<32xf32>
    %17 = vector.shape_cast %16 : vector<32xf32> to vector<32x1xf32>
    %18 = tpu.reciprocal %17 {approx = true} : vector<32x1xf32> -> vector<32x1xf32>
    %19 = vector.broadcast %18 : vector<32x1xf32> to vector<32x8xf32>
    %20 = arith.mulf %15, %19 : vector<32x8xf32>
    %21 = vector.extract_strided_slice %9 {offsets = [0, 8], sizes = [32, 8], strides = [1, 1]} : vector<32x24xf32> to vector<32x8xf32>
    %cst_12 = arith.constant dense<0xFF800000> : vector<32xf32>
    %22 = vector.multi_reduction <maximumf>, %21, %cst_12 [1] : vector<32x8xf32> to vector<32xf32>
    %23 = vector.shape_cast %22 : vector<32xf32> to vector<32x1xf32>
    %24 = vector.broadcast %23 : vector<32x1xf32> to vector<32x8xf32>
    %25 = arith.subf %21, %24 : vector<32x8xf32>
    %26 = math.exp %25 : vector<32x8xf32>
    %cst_13 = arith.constant dense<0.000000e+00> : vector<32xf32>
    %27 = vector.multi_reduction <add>, %26, %cst_13 [1] : vector<32x8xf32> to vector<32xf32>
    %28 = vector.shape_cast %27 : vector<32xf32> to vector<32x1xf32>
    %29 = tpu.reciprocal %28 {approx = true} : vector<32x1xf32> -> vector<32x1xf32>
    %30 = vector.broadcast %29 : vector<32x1xf32> to vector<32x8xf32>
    %31 = arith.mulf %26, %30 : vector<32x8xf32>
    %32 = vector.extract_strided_slice %9 {offsets = [0, 16], sizes = [32, 8], strides = [1, 1]} : vector<32x24xf32> to vector<32x8xf32>
    %cst_14 = arith.constant dense<0xFF800000> : vector<32xf32>
    %33 = vector.multi_reduction <maximumf>, %32, %cst_14 [1] : vector<32x8xf32> to vector<32xf32>
    %34 = vector.shape_cast %33 : vector<32xf32> to vector<32x1xf32>
    %35 = vector.broadcast %34 : vector<32x1xf32> to vector<32x8xf32>
    %36 = arith.subf %32, %35 : vector<32x8xf32>
    %37 = math.exp %36 : vector<32x8xf32>
    %cst_15 = arith.constant dense<0.000000e+00> : vector<32xf32>
    %38 = vector.multi_reduction <add>, %37, %cst_15 [1] : vector<32x8xf32> to vector<32xf32>
    %39 = vector.shape_cast %38 : vector<32xf32> to vector<32x1xf32>
    %40 = tpu.reciprocal %39 {approx = true} : vector<32x1xf32> -> vector<32x1xf32>
    %41 = vector.broadcast %40 : vector<32x1xf32> to vector<32x8xf32>
    %42 = arith.mulf %37, %41 : vector<32x8xf32>
    %43 = tpu.concatenate %20, %31, %42 in 1 : vector<32x8xf32>, vector<32x8xf32>, vector<32x8xf32> -> vector<32x24xf32>
    %c0_16 = arith.constant 0 : index
    %c0_17 = arith.constant 0 : index
    %44 = vector.load %arg6[%c0_16, %c0_17] : memref<24x64xf32, #tpu.memory_space<vmem>>, vector<24x64xf32>
    %cst_18 = arith.constant dense<0.000000e+00> : vector<32x64xf32>
    %45 = tpu.matmul %43, %44, %cst_18 {dimension_numbers = #tpu.dot_dimension_numbers<[1], [0], [0], [1], [0, 0, 1, 1], [], []>} : vector<32x24xf32>, vector<24x64xf32>, vector<32x64xf32> -> vector<32x64xf32>
    %c0_19 = arith.constant 0 : index
    %c0_20 = arith.constant 0 : index
    %46 = vector.load %arg7[%c0_19, %c0_20] : memref<64x64xf32, #tpu.memory_space<vmem>>, vector<64x64xf32>
    %cst_21 = arith.constant dense<0.000000e+00> : vector<32x64xf32>
    %47 = tpu.matmul %45, %46, %cst_21 {dimension_numbers = #tpu.dot_dimension_numbers<[1], [0], [0], [1], [0, 0, 1, 1], [], []>} : vector<32x64xf32>, vector<64x64xf32>, vector<32x64xf32> -> vector<32x64xf32>
    %c0_22 = arith.constant 0 : index
    %c0_23 = arith.constant 0 : index
    %48 = vector.load %arg8[%c0_22, %c0_23] : memref<1x64xf32, #tpu.memory_space<vmem>>, vector<1x64xf32>
    %49 = vector.broadcast %48 : vector<1x64xf32> to vector<32x64xf32>
    %50 = arith.addf %47, %49 : vector<32x64xf32>
    %cst_24 = arith.constant 0.000000e+00 : f32
    %51 = vector.broadcast %cst_24 : f32 to vector<32x64xf32>
    %52 = arith.maximumf %50, %51 : vector<32x64xf32>
    %c0_25 = arith.constant 0 : index
    %c0_26 = arith.constant 0 : index
    %53 = vector.load %arg9[%c0_25, %c0_26] : memref<64x64xf32, #tpu.memory_space<vmem>>, vector<64x64xf32>
    %cst_27 = arith.constant dense<0.000000e+00> : vector<32x64xf32>
    %54 = tpu.matmul %52, %53, %cst_27 {dimension_numbers = #tpu.dot_dimension_numbers<[1], [0], [0], [1], [0, 0, 1, 1], [], []>} : vector<32x64xf32>, vector<64x64xf32>, vector<32x64xf32> -> vector<32x64xf32>
    %c0_28 = arith.constant 0 : index
    %c0_29 = arith.constant 0 : index
    %55 = vector.load %arg10[%c0_28, %c0_29] : memref<1x64xf32, #tpu.memory_space<vmem>>, vector<1x64xf32>
    %56 = vector.broadcast %55 : vector<1x64xf32> to vector<32x64xf32>
    %57 = arith.addf %54, %56 : vector<32x64xf32>
    %cst_30 = arith.constant 0.000000e+00 : f32
    %58 = vector.broadcast %cst_30 : f32 to vector<32x64xf32>
    %59 = arith.maximumf %57, %58 : vector<32x64xf32>
    %c0_31 = arith.constant 0 : index
    %c0_32 = arith.constant 0 : index
    %60 = vector.load %arg11[%c0_31, %c0_32] : memref<64x64xf32, #tpu.memory_space<vmem>>, vector<64x64xf32>
    %cst_33 = arith.constant dense<0.000000e+00> : vector<32x64xf32>
    %61 = tpu.matmul %59, %60, %cst_33 {dimension_numbers = #tpu.dot_dimension_numbers<[1], [0], [0], [1], [0, 0, 1, 1], [], []>} : vector<32x64xf32>, vector<64x64xf32>, vector<32x64xf32> -> vector<32x64xf32>
    %c0_34 = arith.constant 0 : index
    %c0_35 = arith.constant 0 : index
    %62 = vector.load %arg12[%c0_34, %c0_35] : memref<1x64xf32, #tpu.memory_space<vmem>>, vector<1x64xf32>
    %63 = vector.broadcast %62 : vector<1x64xf32> to vector<32x64xf32>
    %64 = arith.addf %61, %63 : vector<32x64xf32>
    %cst_36 = arith.constant 0.000000e+00 : f32
    %65 = vector.broadcast %cst_36 : f32 to vector<32x64xf32>
    %66 = arith.maximumf %64, %65 : vector<32x64xf32>
    %67 = tpu.concatenate %6, %66 in 1 : vector<32x32xf32>, vector<32x64xf32> -> vector<32x96xf32>
    %c0_37 = arith.constant 0 : index
    %c0_38 = arith.constant 0 : index
    %68 = vector.load %arg13[%c0_37, %c0_38] : memref<96x128xf32, #tpu.memory_space<vmem>>, vector<96x128xf32>
    %cst_39 = arith.constant dense<0.000000e+00> : vector<32x128xf32>
    %69 = tpu.matmul %67, %68, %cst_39 {dimension_numbers = #tpu.dot_dimension_numbers<[1], [0], [0], [1], [0, 0, 1, 1], [], []>} : vector<32x96xf32>, vector<96x128xf32>, vector<32x128xf32> -> vector<32x128xf32>
    %c0_40 = arith.constant 0 : index
    %c0_41 = arith.constant 0 : index
    %70 = vector.load %arg14[%c0_40, %c0_41] : memref<1x128xf32, #tpu.memory_space<vmem>>, vector<1x128xf32>
    %71 = vector.broadcast %70 : vector<1x128xf32> to vector<32x128xf32>
    %72 = arith.addf %69, %71 : vector<32x128xf32>
    %cst_42 = arith.constant 0.000000e+00 : f32
    %73 = vector.broadcast %cst_42 : f32 to vector<32x128xf32>
    %74 = arith.maximumf %72, %73 : vector<32x128xf32>
    %c0_43 = arith.constant 0 : index
    %c0_44 = arith.constant 0 : index
    %75 = vector.load %arg15[%c0_43, %c0_44] : memref<32x128xf32, #tpu.memory_space<vmem>>, vector<32x128xf32>
    tpu.vector_store %arg15[%c0_43, %c0_44], %74 {strides = array<i32>} : memref<32x128xf32, #tpu.memory_space<vmem>>, vector<32x128xf32>,
    return
  }
  func.func @transform_0(%arg0: i32) -> (i32, i32) {
    %c0_i32 = arith.constant 0 : i32
    %c0_i32_0 = arith.constant 0 : i32
    return %arg0, %c0_i32 : i32, i32
  }
  func.func @transform_1(%arg0: i32) -> (i32, i32) {
    %c0_i32 = arith.constant 0 : i32
    %c0_i32_0 = arith.constant 0 : i32
    return %arg0, %c0_i32 : i32, i32
  }
  func.func @transform_2(%arg0: i32) -> (i32, i32) {
    %c0_i32 = arith.constant 0 : i32
    %c0_i32_0 = arith.constant 0 : i32
    %c0_i32_1 = arith.constant 0 : i32
    return %c0_i32, %c0_i32_0 : i32, i32
  }
  func.func @transform_3(%arg0: i32) -> (i32, i32) {
    %c0_i32 = arith.constant 0 : i32
    %c0_i32_0 = arith.constant 0 : i32
    %c0_i32_1 = arith.constant 0 : i32
    return %c0_i32, %c0_i32_0 : i32, i32
  }
  func.func @transform_4(%arg0: i32) -> (i32, i32) {
    %c0_i32 = arith.constant 0 : i32
    %c0_i32_0 = arith.constant 0 : i32
    %c0_i32_1 = arith.constant 0 : i32
    return %c0_i32, %c0_i32_0 : i32, i32
  }
  func.func @transform_5(%arg0: i32) -> (i32, i32) {
    %c0_i32 = arith.constant 0 : i32
    %c0_i32_0 = arith.constant 0 : i32
    %c0_i32_1 = arith.constant 0 : i32
    return %c0_i32, %c0_i32_0 : i32, i32
  }
  func.func @transform_6(%arg0: i32) -> (i32, i32) {
    %c0_i32 = arith.constant 0 : i32
    %c0_i32_0 = arith.constant 0 : i32
    %c0_i32_1 = arith.constant 0 : i32
    return %c0_i32, %c0_i32_0 : i32, i32
  }
  func.func @transform_7(%arg0: i32) -> (i32, i32) {
    %c0_i32 = arith.constant 0 : i32
    %c0_i32_0 = arith.constant 0 : i32
    %c0_i32_1 = arith.constant 0 : i32
    return %c0_i32, %c0_i32_0 : i32, i32
  }
  func.func @transform_8(%arg0: i32) -> (i32, i32) {
    %c0_i32 = arith.constant 0 : i32
    %c0_i32_0 = arith.constant 0 : i32
    %c0_i32_1 = arith.constant 0 : i32
    return %c0_i32, %c0_i32_0 : i32, i32
  }
  func.func @transform_9(%arg0: i32) -> (i32, i32) {
    %c0_i32 = arith.constant 0 : i32
    %c0_i32_0 = arith.constant 0 : i32
    %c0_i32_1 = arith.constant 0 : i32
    return %c0_i32, %c0_i32_0 : i32, i32
  }
  func.func @transform_10(%arg0: i32) -> (i32, i32) {
    %c0_i32 = arith.constant 0 : i32
    %c0_i32_0 = arith.constant 0 : i32
    %c0_i32_1 = arith.constant 0 : i32
    return %c0_i32, %c0_i32_0 : i32, i32
  }
  func.func @transform_11(%arg0: i32) -> (i32, i32) {
    %c0_i32 = arith.constant 0 : i32
    %c0_i32_0 = arith.constant 0 : i32
    %c0_i32_1 = arith.constant 0 : i32
    return %c0_i32, %c0_i32_0 : i32, i32
  }
  func.func @transform_12(%arg0: i32) -> (i32, i32) {
    %c0_i32 = arith.constant 0 : i32
    %c0_i32_0 = arith.constant 0 : i32
    %c0_i32_1 = arith.constant 0 : i32
    return %c0_i32, %c0_i32_0 : i32, i32
  }
  func.func @transform_13(%arg0: i32) -> (i32, i32) {
    %c0_i32 = arith.constant 0 : i32
    %c0_i32_0 = arith.constant 0 : i32
    %c0_i32_1 = arith.constant 0 : i32
    return %c0_i32, %c0_i32_0 : i32, i32
  }
  func.func @transform_14(%arg0: i32) -> (i32, i32) {
    %c0_i32 = arith.constant 0 : i32
    %c0_i32_0 = arith.constant 0 : i32
    return %arg0, %c0_i32 : i32, i32
  }
}

</mosaic_0001>

<llo_original>
// kernel: tpu_custom_call.1
$region0: #{tpu_custom_call.1}
  #allocation0 [shape = 'u32[]', space=smem, size = 0x4, offset = 0x4, fixed_abs, tag = 'smem constant byte address 0x4 - core index']
  #allocation1 [shape = 'u32[144,128]{1,0:T(1,128)}', space=vmem, size = 0x12000, scoped, tag = 'internal scratch']
  %s0 = inlined_call_operand.vmem [shape: f32[128,16], index: 0, kind: input, shape index: {}]
  %s1 = inlined_call_operand.vmem [shape: f32[128,32], index: 1, kind: input, shape index: {}]
  %s2 = inlined_call_operand.vmem [shape: f32[16,32], index: 2, kind: input, shape index: {}]
  %s3 = inlined_call_operand.vmem [shape: f32[1,32], index: 3, kind: input, shape index: {}]
  %s4 = inlined_call_operand.vmem [shape: f32[32,24], index: 4, kind: input, shape index: {}]
  %s5 = inlined_call_operand.vmem [shape: f32[24,64], index: 5, kind: input, shape index: {}]
  %s6 = inlined_call_operand.vmem [shape: f32[64,64], index: 6, kind: input, shape index: {}]
  %s7 = inlined_call_operand.vmem [shape: f32[1,64], index: 7, kind: input, shape index: {}]
  %s8 = inlined_call_operand.vmem [shape: f32[64,64], index: 8, kind: input, shape index: {}]
  %s9 = inlined_call_operand.vmem [shape: f32[1,64], index: 9, kind: input, shape index: {}]
  %s10 = inlined_call_operand.vmem [shape: f32[64,64], index: 10, kind: input, shape index: {}]
  %s11 = inlined_call_operand.vmem [shape: f32[1,64], index: 11, kind: input, shape index: {}]
  %s12 = inlined_call_operand.vmem [shape: f32[96,128], index: 12, kind: input, shape index: {}]
  %s13 = inlined_call_operand.vmem [shape: f32[1,128], index: 13, kind: input, shape index: {}]
  %s14 = inlined_call_operand.hbm [shape: f32[128,128], index: 14, kind: output, shape index: {}]
  %s15 = sld [smem:[#allocation0]]
  $region89: #{tpu_custom_call.1} parent=0
    _
  %s17 = ssub.s32 1, %s15
  %s18 = scalar_select 0, %s17, %s15
  $region1: #{tpu_custom_call.1} parent=0
    #allocation2 [shape = 'u8[32768]{0}', space=vmem, size = 0x8000, scoped, tag = 'output window, operand 0']
    #allocation3 [shape = 's32[2]{0}', space=sflag, size = 0x8, scoped, tag = 'scoped memory for tpu_custom_call.1']
    %19 = vsyncpa [#allocation3], 0
    %s20 = scalar_lea.sflag [#allocation3], 1
    %21 = vsyncpa %s20, 0
    loop: start=0, step=1, limit=6
    $region2: #{tpu_custom_call.1} parent=1 // loop_pre_header
      _
    $region3: #{tpu_custom_call.1} parent=1 // loop_header
      %s23 = sphi 0, %s27
      %p24 = scmp.ge.s32.totalorder %s23, 6
      %s33 = sphi 0, %s35
      %s36 = sphi 0, %s33
      %s37 = sphi 0, %s36
      %s53 = sphi 0, %s37
      %s59 = sphi 0, %s61
      %s62 = sphi 0, %s59
      %s63 = sphi 0, %s62
      %s79 = sphi 0, %s63
      %s83 = sphi 0, %s83
      %s85 = sphi 0, %s83
      %s86 = sphi 0, %s85
      %s100 = sphi 0, %s86
      %s104 = sphi 0, %s104
      %s106 = sphi 0, %s104
      %s107 = sphi 0, %s106
      %s121 = sphi 0, %s107
      %s125 = sphi 0, %s125
      %s127 = sphi 0, %s125
      %s128 = sphi 0, %s127
      %s142 = sphi 0, %s128
      %s146 = sphi 0, %s146
      %s148 = sphi 0, %s146
      %s149 = sphi 0, %s148
      %s163 = sphi 0, %s149
      %s167 = sphi 0, %s167
      %s169 = sphi 0, %s167
      %s170 = sphi 0, %s169
      %s184 = sphi 0, %s170
      %s188 = sphi 0, %s188
      %s190 = sphi 0, %s188
      %s191 = sphi 0, %s190
      %s205 = sphi 0, %s191
      %s209 = sphi 0, %s209
      %s211 = sphi 0, %s209
      %s212 = sphi 0, %s211
      %s226 = sphi 0, %s212
      %s230 = sphi 0, %s230
      %s232 = sphi 0, %s230
      %s233 = sphi 0, %s232
      %s247 = sphi 0, %s233
      %s251 = sphi 0, %s251
      %s253 = sphi 0, %s251
      %s254 = sphi 0, %s253
      %s268 = sphi 0, %s254
      %s272 = sphi 0, %s272
      %s274 = sphi 0, %s272
      %s275 = sphi 0, %s274
      %s289 = sphi 0, %s275
      %s293 = sphi 0, %s293
      %s295 = sphi 0, %s293
      %s296 = sphi 0, %s295
      %s310 = sphi 0, %s296
      %s314 = sphi 0, %s314
      %s316 = sphi 0, %s314
      %s317 = sphi 0, %s316
      %s331 = sphi 0, %s317
      %s337 = sphi 0, %s339
      %s340 = sphi 0, %s337
      %s341 = sphi 0, %s340
      %s357 = sphi 0, %s341
    $region4: #{tpu_custom_call.1} parent=1 // loop_header_branch
      %26 = sbr.rel (%p24) target = $region8
    $region5: #{tpu_custom_call.1} parent=1 // loop_body
      %s28 = ssub.s32 %s23, 1
      %s29 = ssub.s32 %s23, 2
      %s30 = sadd.s32 %s23, 1
      %s31 = ssub.s32 %s23, %s30
      %p32 = scmp.eq.s32.totalorder %s31, 0
      %s34 = sadd.s32 %s33, 1
      %s35 = scalar_select %p32, %s33, %s34
      %p38 = pneg %p32
      %p39 = scmp.eq.s32.totalorder %s23, 3
      %p40 = por %p38, %p39
      %p41 = scmp.ne.s32.totalorder %s33, %s36
      %p42 = scmp.eq.s32.totalorder %s23, 0
      %p43 = por %p41, %p42
      %p44 = scmp.ne.s32.totalorder %s33, %s36
      %p45 = scmp.eq.s32.totalorder %s28, 3
      %p46 = por %p44, %p45
      %p47 = scmp.ne.s32.totalorder %s36, %s37
      %p48 = scmp.eq.s32.totalorder %s28, 0
      %p49 = por %p47, %p48
      %p50 = scmp.ne.s32.totalorder %s36, %s37
      %p51 = scmp.eq.s32.totalorder %s29, 3
      %p52 = por %p50, %p51
      %p54 = scmp.ne.s32.totalorder %s37, %s53
      %p55 = scmp.eq.s32.totalorder %s29, 0
      %p56 = por %p54, %p55
      %s57 = ssub.s32 %s23, %s30
      %p58 = scmp.eq.s32.totalorder %s57, 0
      %s60 = sadd.s32 %s59, 1
      %s61 = scalar_select %p58, %s59, %s60
      %p64 = pneg %p58
      %p65 = scmp.eq.s32.totalorder %s23, 3
      %p66 = por %p64, %p65
      %p67 = scmp.ne.s32.totalorder %s59, %s62
      %p68 = scmp.eq.s32.totalorder %s23, 0
      %p69 = por %p67, %p68
      %p70 = scmp.ne.s32.totalorder %s59, %s62
      %p71 = scmp.eq.s32.totalorder %s28, 3
      %p72 = por %p70, %p71
      %p73 = scmp.ne.s32.totalorder %s62, %s63
      %p74 = scmp.eq.s32.totalorder %s28, 0
      %p75 = por %p73, %p74
      %p76 = scmp.ne.s32.totalorder %s62, %s63
      %p77 = scmp.eq.s32.totalorder %s29, 3
      %p78 = por %p76, %p77
      %p80 = scmp.ne.s32.totalorder %s63, %s79
      %p81 = scmp.eq.s32.totalorder %s29, 0
      %p82 = por %p80, %p81
      %s84 = sadd.s32 %s83, 1
      %p87 = scmp.eq.s32.totalorder %s23, 3
      %p88 = scmp.ne.s32.totalorder %s83, %s85
      %p89 = scmp.eq.s32.totalorder %s23, 0
      %p90 = por %p88, %p89
      %p91 = scmp.ne.s32.totalorder %s83, %s85
      %p92 = scmp.eq.s32.totalorder %s28, 3
      %p93 = por %p91, %p92
      %p94 = scmp.ne.s32.totalorder %s85, %s86
      %p95 = scmp.eq.s32.totalorder %s28, 0
      %p96 = por %p94, %p95
      %p97 = scmp.ne.s32.totalorder %s85, %s86
      %p98 = scmp.eq.s32.totalorder %s29, 3
      %p99 = por %p97, %p98
      %p101 = scmp.ne.s32.totalorder %s86, %s100
      %p102 = scmp.eq.s32.totalorder %s29, 0
      %p103 = por %p101, %p102
      %s105 = sadd.s32 %s104, 1
      %p108 = scmp.eq.s32.totalorder %s23, 3
      %p109 = scmp.ne.s32.totalorder %s104, %s106
      %p110 = scmp.eq.s32.totalorder %s23, 0
      %p111 = por %p109, %p110
      %p112 = scmp.ne.s32.totalorder %s104, %s106
      %p113 = scmp.eq.s32.totalorder %s28, 3
      %p114 = por %p112, %p113
      %p115 = scmp.ne.s32.totalorder %s106, %s107
      %p116 = scmp.eq.s32.totalorder %s28, 0
      %p117 = por %p115, %p116
      %p118 = scmp.ne.s32.totalorder %s106, %s107
      %p119 = scmp.eq.s32.totalorder %s29, 3
      %p120 = por %p118, %p119
      %p122 = scmp.ne.s32.totalorder %s107, %s121
      %p123 = scmp.eq.s32.totalorder %s29, 0
      %p124 = por %p122, %p123
      %s126 = sadd.s32 %s125, 1
      %p129 = scmp.eq.s32.totalorder %s23, 3
      %p130 = scmp.ne.s32.totalorder %s125, %s127
      %p131 = scmp.eq.s32.totalorder %s23, 0
      %p132 = por %p130, %p131
      %p133 = scmp.ne.s32.totalorder %s125, %s127
      %p134 = scmp.eq.s32.totalorder %s28, 3
      %p135 = por %p133, %p134
      %p136 = scmp.ne.s32.totalorder %s127, %s128
      %p137 = scmp.eq.s32.totalorder %s28, 0
      %p138 = por %p136, %p137
      %p139 = scmp.ne.s32.totalorder %s127, %s128
      %p140 = scmp.eq.s32.totalorder %s29, 3
      %p141 = por %p139, %p140
      %p143 = scmp.ne.s32.totalorder %s128, %s142
      %p144 = scmp.eq.s32.totalorder %s29, 0
      %p145 = por %p143, %p144
      %s147 = sadd.s32 %s146, 1
      %p150 = scmp.eq.s32.totalorder %s23, 3
      %p151 = scmp.ne.s32.totalorder %s146, %s148
      %p152 = scmp.eq.s32.totalorder %s23, 0
      %p153 = por %p151, %p152
      %p154 = scmp.ne.s32.totalorder %s146, %s148
      %p155 = scmp.eq.s32.totalorder %s28, 3
      %p156 = por %p154, %p155
      %p157 = scmp.ne.s32.totalorder %s148, %s149
      %p158 = scmp.eq.s32.totalorder %s28, 0
      %p159 = por %p157, %p158
      %p160 = scmp.ne.s32.totalorder %s148, %s149
      %p161 = scmp.eq.s32.totalorder %s29, 3
      %p162 = por %p160, %p161
      %p164 = scmp.ne.s32.totalorder %s149, %s163
      %p165 = scmp.eq.s32.totalorder %s29, 0
      %p166 = por %p164, %p165
      %s168 = sadd.s32 %s167, 1
      %p171 = scmp.eq.s32.totalorder %s23, 3
      %p172 = scmp.ne.s32.totalorder %s167, %s169
      %p173 = scmp.eq.s32.totalorder %s23, 0
      %p174 = por %p172, %p173
      %p175 = scmp.ne.s32.totalorder %s167, %s169
      %p176 = scmp.eq.s32.totalorder %s28, 3
      %p177 = por %p175, %p176
      %p178 = scmp.ne.s32.totalorder %s169, %s170
      %p179 = scmp.eq.s32.totalorder %s28, 0
      %p180 = por %p178, %p179
      %p181 = scmp.ne.s32.totalorder %s169, %s170
      %p182 = scmp.eq.s32.totalorder %s29, 3
      %p183 = por %p181, %p182
      %p185 = scmp.ne.s32.totalorder %s170, %s184
      %p186 = scmp.eq.s32.totalorder %s29, 0
      %p187 = por %p185, %p186
      %s189 = sadd.s32 %s188, 1
      %p192 = scmp.eq.s32.totalorder %s23, 3
      %p193 = scmp.ne.s32.totalorder %s188, %s190
      %p194 = scmp.eq.s32.totalorder %s23, 0
      %p195 = por %p193, %p194
      %p196 = scmp.ne.s32.totalorder %s188, %s190
      %p197 = scmp.eq.s32.totalorder %s28, 3
      %p198 = por %p196, %p197
      %p199 = scmp.ne.s32.totalorder %s190, %s191
      %p200 = scmp.eq.s32.totalorder %s28, 0
      %p201 = por %p199, %p200
      %p202 = scmp.ne.s32.totalorder %s190, %s191
      %p203 = scmp.eq.s32.totalorder %s29, 3
      %p204 = por %p202, %p203
      %p206 = scmp.ne.s32.totalorder %s191, %s205
      %p207 = scmp.eq.s32.totalorder %s29, 0
      %p208 = por %p206, %p207
      %s210 = sadd.s32 %s209, 1
      %p213 = scmp.eq.s32.totalorder %s23, 3
      %p214 = scmp.ne.s32.totalorder %s209, %s211
      %p215 = scmp.eq.s32.totalorder %s23, 0
      %p216 = por %p214, %p215
      %p217 = scmp.ne.s32.totalorder %s209, %s211
      %p218 = scmp.eq.s32.totalorder %s28, 3
      %p219 = por %p217, %p218
      %p220 = scmp.ne.s32.totalorder %s211, %s212
      %p221 = scmp.eq.s32.totalorder %s28, 0
      %p222 = por %p220, %p221
      %p223 = scmp.ne.s32.totalorder %s211, %s212
      %p224 = scmp.eq.s32.totalorder %s29, 3
      %p225 = por %p223, %p224
      %p227 = scmp.ne.s32.totalorder %s212, %s226
      %p228 = scmp.eq.s32.totalorder %s29, 0
      %p229 = por %p227, %p228
      %s231 = sadd.s32 %s230, 1
      %p234 = scmp.eq.s32.totalorder %s23, 3
      %p235 = scmp.ne.s32.totalorder %s230, %s232
      %p236 = scmp.eq.s32.totalorder %s23, 0
      %p237 = por %p235, %p236
      %p238 = scmp.ne.s32.totalorder %s230, %s232
      %p239 = scmp.eq.s32.totalorder %s28, 3
      %p240 = por %p238, %p239
      %p241 = scmp.ne.s32.totalorder %s232, %s233
      %p242 = scmp.eq.s32.totalorder %s28, 0
      %p243 = por %p241, %p242
      %p244 = scmp.ne.s32.totalorder %s232, %s233
      %p245 = scmp.eq.s32.totalorder %s29, 3
      %p246 = por %p244, %p245
      %p248 = scmp.ne.s32.totalorder %s233, %s247
      %p249 = scmp.eq.s32.totalorder %s29, 0
      %p250 = por %p248, %p249
      %s252 = sadd.s32 %s251, 1
      %p255 = scmp.eq.s32.totalorder %s23, 3
      %p256 = scmp.ne.s32.totalorder %s251, %s253
      %p257 = scmp.eq.s32.totalorder %s23, 0
      %p258 = por %p256, %p257
      %p259 = scmp.ne.s32.totalorder %s251, %s253
      %p260 = scmp.eq.s32.totalorder %s28, 3
      %p261 = por %p259, %p260
      %p262 = scmp.ne.s32.totalorder %s253, %s254
      %p263 = scmp.eq.s32.totalorder %s28, 0
      %p264 = por %p262, %p263
      %p265 = scmp.ne.s32.totalorder %s253, %s254
      %p266 = scmp.eq.s32.totalorder %s29, 3
      %p267 = por %p265, %p266
      %p269 = scmp.ne.s32.totalorder %s254, %s268
      %p270 = scmp.eq.s32.totalorder %s29, 0
      %p271 = por %p269, %p270
      %s273 = sadd.s32 %s272, 1
      %p276 = scmp.eq.s32.totalorder %s23, 3
      %p277 = scmp.ne.s32.totalorder %s272, %s274
      %p278 = scmp.eq.s32.totalorder %s23, 0
      %p279 = por %p277, %p278
      %p280 = scmp.ne.s32.totalorder %s272, %s274
      %p281 = scmp.eq.s32.totalorder %s28, 3
      %p282 = por %p280, %p281
      %p283 = scmp.ne.s32.totalorder %s274, %s275
      %p284 = scmp.eq.s32.totalorder %s28, 0
      %p285 = por %p283, %p284
      %p286 = scmp.ne.s32.totalorder %s274, %s275
      %p287 = scmp.eq.s32.totalorder %s29, 3
      %p288 = por %p286, %p287
      %p290 = scmp.ne.s32.totalorder %s275, %s289
      %p291 = scmp.eq.s32.totalorder %s29, 0
      %p292 = por %p290, %p291
      %s294 = sadd.s32 %s293, 1
      %p297 = scmp.eq.s32.totalorder %s23, 3
      %p298 = scmp.ne.s32.totalorder %s293, %s295
      %p299 = scmp.eq.s32.totalorder %s23, 0
      %p300 = por %p298, %p299
      %p301 = scmp.ne.s32.totalorder %s293, %s295
      %p302 = scmp.eq.s32.totalorder %s28, 3
      %p303 = por %p301, %p302
      %p304 = scmp.ne.s32.totalorder %s295, %s296
      %p305 = scmp.eq.s32.totalorder %s28, 0
      %p306 = por %p304, %p305
      %p307 = scmp.ne.s32.totalorder %s295, %s296
      %p308 = scmp.eq.s32.totalorder %s29, 3
      %p309 = por %p307, %p308
      %p311 = scmp.ne.s32.totalorder %s296, %s310
      %p312 = scmp.eq.s32.totalorder %s29, 0
      %p313 = por %p311, %p312
      %s315 = sadd.s32 %s314, 1
      %p318 = scmp.eq.s32.totalorder %s23, 3
      %p319 = scmp.ne.s32.totalorder %s314, %s316
      %p320 = scmp.eq.s32.totalorder %s23, 0
      %p321 = por %p319, %p320
      %p322 = scmp.ne.s32.totalorder %s314, %s316
      %p323 = scmp.eq.s32.totalorder %s28, 3
      %p324 = por %p322, %p323
      %p325 = scmp.ne.s32.totalorder %s316, %s317
      %p326 = scmp.eq.s32.totalorder %s28, 0
      %p327 = por %p325, %p326
      %p328 = scmp.ne.s32.totalorder %s316, %s317
      %p329 = scmp.eq.s32.totalorder %s29, 3
      %p330 = por %p328, %p329
      %p332 = scmp.ne.s32.totalorder %s317, %s331
      %p333 = scmp.eq.s32.totalorder %s29, 0
      %p334 = por %p332, %p333
      %s335 = ssub.s32 %s23, %s30
      %p336 = scmp.eq.s32.totalorder %s335, 0
      %s338 = sadd.s32 %s337, 1
      %s339 = scalar_select %p336, %s337, %s338
      %p342 = pneg %p336
      %p343 = scmp.eq.s32.totalorder %s23, 3
      %p344 = por %p342, %p343
      %p345 = scmp.ne.s32.totalorder %s337, %s340
      %p346 = scmp.eq.s32.totalorder %s23, 0
      %p347 = por %p345, %p346
      %p348 = scmp.ne.s32.totalorder %s337, %s340
      %p349 = scmp.eq.s32.totalorder %s28, 3
      %p350 = por %p348, %p349
      %p351 = scmp.ne.s32.totalorder %s340, %s341
      %p352 = scmp.eq.s32.totalorder %s28, 0
      %p353 = por %p351, %p352
      %p354 = scmp.ne.s32.totalorder %s340, %s341
      %p355 = scmp.eq.s32.totalorder %s29, 3
      %p356 = por %p354, %p355
      %p358 = scmp.ne.s32.totalorder %s341, %s357
      %p359 = scmp.eq.s32.totalorder %s29, 0
      %p360 = por %p358, %p359
      %p361 = scmp.le.s32.totalorder 1, %s23
      %p362 = scmp.lt.s32.totalorder %s23, 5
      %p363 = pnand %p361, %p362
      %p364 = pneg %p363
      // Predicated region
      $region9: #{tpu_custom_call.1} parent=5 // pred_check
        _
      $region10: #{tpu_custom_call.1} parent=5 // pred_check_branch
        %366 = sbr.rel (%p363) target = $region12
      $region11: #{tpu_custom_call.1} parent=5 // pred_region
        %s367 = ssub.s32 %s23, 1
        // Predicated region
        $region13: #{tpu_custom_call.1} parent=11 // pred_check
          %p368 = pneg %p96
        $region14: #{tpu_custom_call.1} parent=11 // pred_check_branch
          %370 = sbr.rel (%p368) target = $region16
        $region15: #{tpu_custom_call.1} parent=11 // pred_region
          _
        $region16: #{tpu_custom_call.1} parent=11 // pred_fallthru
          _
        // Predicated region
        $region17: #{tpu_custom_call.1} parent=11 // pred_check
          %p371 = pneg %p117
        $region18: #{tpu_custom_call.1} parent=11 // pred_check_branch
          %373 = sbr.rel (%p371) target = $region20
        $region19: #{tpu_custom_call.1} parent=11 // pred_region
          _
        $region20: #{tpu_custom_call.1} parent=11 // pred_fallthru
          _
        // Predicated region
        $region21: #{tpu_custom_call.1} parent=11 // pred_check
          %p374 = pneg %p138
        $region22: #{tpu_custom_call.1} parent=11 // pred_check_branch
          %376 = sbr.rel (%p374) target = $region24
        $region23: #{tpu_custom_call.1} parent=11 // pred_region
          _
        $region24: #{tpu_custom_call.1} parent=11 // pred_fallthru
          _
        // Predicated region
        $region25: #{tpu_custom_call.1} parent=11 // pred_check
          %p377 = pneg %p159
        $region26: #{tpu_custom_call.1} parent=11 // pred_check_branch
          %379 = sbr.rel (%p377) target = $region28
        $region27: #{tpu_custom_call.1} parent=11 // pred_region
          _
        $region28: #{tpu_custom_call.1} parent=11 // pred_fallthru
          _
        // Predicated region
        $region29: #{tpu_custom_call.1} parent=11 // pred_check
          %p380 = pneg %p180
        $region30: #{tpu_custom_call.1} parent=11 // pred_check_branch
          %382 = sbr.rel (%p380) target = $region32
        $region31: #{tpu_custom_call.1} parent=11 // pred_region
          _
        $region32: #{tpu_custom_call.1} parent=11 // pred_fallthru
          _
        // Predicated region
        $region33: #{tpu_custom_call.1} parent=11 // pred_check
          %p383 = pneg %p201
        $region34: #{tpu_custom_call.1} parent=11 // pred_check_branch
          %385 = sbr.rel (%p383) target = $region36
        $region35: #{tpu_custom_call.1} parent=11 // pred_region
          _
        $region36: #{tpu_custom_call.1} parent=11 // pred_fallthru
          _
        // Predicated region
        $region37: #{tpu_custom_call.1} parent=11 // pred_check
          %p386 = pneg %p222
        $region38: #{tpu_custom_call.1} parent=11 // pred_check_branch
          %388 = sbr.rel (%p386) target = $region40
        $region39: #{tpu_custom_call.1} parent=11 // pred_region
          _
        $region40: #{tpu_custom_call.1} parent=11 // pred_fallthru
          _
        // Predicated region
        $region41: #{tpu_custom_call.1} parent=11 // pred_check
          %p389 = pneg %p243
        $region42: #{tpu_custom_call.1} parent=11 // pred_check_branch
          %391 = sbr.rel (%p389) target = $region44
        $region43: #{tpu_custom_call.1} parent=11 // pred_region
          _
        $region44: #{tpu_custom_call.1} parent=11 // pred_fallthru
          _
        // Predicated region
        $region45: #{tpu_custom_call.1} parent=11 // pred_check
          %p392 = pneg %p264
        $region46: #{tpu_custom_call.1} parent=11 // pred_check_branch
          %394 = sbr.rel (%p392) target = $region48
        $region47: #{tpu_custom_call.1} parent=11 // pred_region
          _
        $region48: #{tpu_custom_call.1} parent=11 // pred_fallthru
          _
        // Predicated region
        $region49: #{tpu_custom_call.1} parent=11 // pred_check
          %p395 = pneg %p285
        $region50: #{tpu_custom_call.1} parent=11 // pred_check_branch
          %397 = sbr.rel (%p395) target = $region52
        $region51: #{tpu_custom_call.1} parent=11 // pred_region
          _
        $region52: #{tpu_custom_call.1} parent=11 // pred_fallthru
          _
        // Predicated region
        $region53: #{tpu_custom_call.1} parent=11 // pred_check
          %p398 = pneg %p306
        $region54: #{tpu_custom_call.1} parent=11 // pred_check_branch
          %400 = sbr.rel (%p398) target = $region56
        $region55: #{tpu_custom_call.1} parent=11 // pred_region
          _
        $region56: #{tpu_custom_call.1} parent=11 // pred_fallthru
          _
        // Predicated region
        $region57: #{tpu_custom_call.1} parent=11 // pred_check
          %p401 = pneg %p327
        $region58: #{tpu_custom_call.1} parent=11 // pred_check_branch
          %403 = sbr.rel (%p401) target = $region60
        $region59: #{tpu_custom_call.1} parent=11 // pred_region
          _
        $region60: #{tpu_custom_call.1} parent=11 // pred_fallthru
          _
      $region12: #{tpu_custom_call.1} parent=5 // pred_fallthru
        _
      %p404 = scmp.lt.s32.totalorder %s23, 4
      // Predicated region
      $region61: #{tpu_custom_call.1} parent=5 // pred_check
        %p405 = pneg %p404
      $region62: #{tpu_custom_call.1} parent=5 // pred_check_branch
        %407 = sbr.rel (%p405) target = $region64
      $region63: #{tpu_custom_call.1} parent=5 // pred_region
        // Predicated region
        $region65: #{tpu_custom_call.1} parent=63 // pred_check
          %p408 = pneg %p43
        $region66: #{tpu_custom_call.1} parent=63 // pred_check_branch
          %410 = sbr.rel (%p408) target = $region68
        $region67: #{tpu_custom_call.1} parent=63 // pred_region
          %s411 = smul.u32 4, %s23
          %p412 = scmp.lt.s32.totalorder %s411, 15
          %s413 = scalar_select %p412, %s411, 15
          %s414 = smul.addr %s413, 8
          %s415 = scalar_lea.vmem %s0, %s414
          %s416 = smul.u32 4, %s23
        $region68: #{tpu_custom_call.1} parent=63 // pred_fallthru
          _
        // Predicated region
        $region69: #{tpu_custom_call.1} parent=63 // pred_check
          %p417 = pneg %p69
        $region70: #{tpu_custom_call.1} parent=63 // pred_check_branch
          %419 = sbr.rel (%p417) target = $region72
        $region71: #{tpu_custom_call.1} parent=63 // pred_region
          %s420 = smul.u32 4, %s23
          %p421 = scmp.lt.s32.totalorder %s420, 15
          %s422 = scalar_select %p421, %s420, 15
          %s423 = smul.addr %s422, 8
          %s424 = scalar_lea.vmem %s1, %s423
          %s425 = smul.u32 4, %s23
        $region72: #{tpu_custom_call.1} parent=63 // pred_fallthru
          _
      $region64: #{tpu_custom_call.1} parent=5 // pred_fallthru
        _
      %p426 = scmp.le.s32.totalorder 1, %s23
      %p427 = scmp.lt.s32.totalorder %s23, 5
      %p428 = pnand %p426, %p427
      %p429 = pneg %p428
      // Predicated region
      $region73: #{tpu_custom_call.1} parent=5 // pred_check
        _
      $region74: #{tpu_custom_call.1} parent=5 // pred_check_branch
        %431 = sbr.rel (%p428) target = $region76
      $region75: #{tpu_custom_call.1} parent=5 // pred_region
        %s432 = ssub.s32 %s23, 1
        %s433 = smul.u32 4, %s28
        %p434 = scmp.lt.s32.totalorder %s433, 15
        %s435 = scalar_select %p434, %s433, 15
        %s436 = smul.addr %s435, 8
        %s437 = scalar_lea.vmem %s0, %s436
        %p438 = pneg %p49
        %p439 = pneg %p46
        %s440 = smul.u32 4, %s28
        %p441 = scmp.lt.s32.totalorder %s440, 15
        %s442 = scalar_select %p441, %s440, 15
        %s443 = smul.addr %s442, 8
        %s444 = scalar_lea.vmem %s1, %s443
        %p445 = pneg %p75
        %p446 = pneg %p72
        %p447 = pneg %p96
        %p448 = pneg %p93
        %p449 = pneg %p117
        %p450 = pneg %p114
        %p451 = pneg %p138
        %p452 = pneg %p135
        %p453 = pneg %p159
        %p454 = pneg %p156
        %p455 = pneg %p180
        %p456 = pneg %p177
        %p457 = pneg %p201
        %p458 = pneg %p198
        %p459 = pneg %p222
        %p460 = pneg %p219
        %p461 = pneg %p243
        %p462 = pneg %p240
        %p463 = pneg %p264
        %p464 = pneg %p261
        %p465 = pneg %p285
        %p466 = pneg %p282
        %p467 = pneg %p306
        %p468 = pneg %p303
        %p469 = pneg %p327
        %p470 = pneg %p324
        %p471 = pneg %p353
        %p472 = pneg %p350
        %s473 = sand.u32 %s340, 1
        %s474 = scalar_lea.sflag [#allocation3], %s473
        %s475 = sand.u32 %s340, 1
        %s476 = smul.addr %s475, 32
        %s477 = scalar_lea.vmem [#allocation2], %s476
        %s478 = smul.u32 4, %s28
        %p479 = scmp.lt.s32.totalorder %s478, 15
        %s480 = scalar_select %p479, %s478, 15
        %s481 = smul.addr %s480, 8
        %s482 = scalar_lea.vmem %s0, %s481
        %s483 = smul.u32 4, %s28
        %s484 = smul.u32 4, %s28
        %p485 = scmp.lt.s32.totalorder %s484, 15
        %s486 = scalar_select %p485, %s484, 15
        %s487 = smul.addr %s486, 8
        %s488 = scalar_lea.vmem %s1, %s487
        %s489 = smul.u32 4, %s28
        %s490 = smul.u32 4, %s28
        %v491 = vld [vmem:[%s482] sm:$0xff]
        %v492 = vld [vmem:[%s482 + $0x8] sm:$0xff]
        %v493 = vld [vmem:[%s482 + $0x10] sm:$0xff]
        %v494 = vld [vmem:[%s482 + $0x18] sm:$0xff]
        %v495 = vld [vmem:[%s2] sm:$0xff]
        %v496 = vld [vmem:[%s2 + $0x8] sm:$0xff]
        %v497 = vld [vmem:[%s3] sm:$0x1]
        %v499 = vlaneseq
        %v500 = vshrl.u32 %v499, 7
        %v501 = vsub.s32 0, %v500
        %v502 = vrot.slane %v497, %v501
        %vm504 = vcmask 130048
        %v506 = vsel %vm504, %v491, 0
        %v509 = vsel %vm504, %v492, 0
        %v512 = vsel %vm504, %v493, 0
        %v515 = vsel %vm504, %v494, 0
        %517 = vmatprep.subr.mxu0 0.0
        %518 = vmatpush1.msra.mxu0 0.0
        %519 = vmatprep.subr.mxu0 0.0
        %520 = vmatpush1.msra.mxu0 0.0
        %521 = vmatprep.subr.mxu0 0.0
        %522 = vmatpush1.msra.mxu0 0.0
        %523 = vmatprep.subr.mxu0 0.0
        %524 = vmatpush1.msra.mxu0 0.0
        %525 = vmatprep.subr.mxu0 0.0
        %526 = vmatpush1.msra.mxu0 0.0
        %527 = vmatprep.subr.mxu0 0.0
        %528 = vmatpush1.msra.mxu0 0.0
        %529 = vmatprep.subr.mxu0 0.0
        %530 = vmatpush1.msra.mxu0 0.0
        %531 = vmatprep.subr.mxu0 0.0
        %532 = vmatpush1.msra.mxu0 0.0
        %533 = vmatprep.subr.mxu0 0.0
        %534 = vmatpush1.msra.mxu0 0.0
        %535 = vmatprep.subr.mxu0 0.0
        %536 = vmatpush1.msra.mxu0 0.0
        %537 = vmatprep.subr.mxu0 0.0
        %538 = vmatpush1.msra.mxu0 0.0
        %539 = vmatprep.subr.mxu0 0.0
        %540 = vmatpush1.msra.mxu0 0.0
        %541 = vmatprep.subr.mxu0 0.0
        %542 = vmatpush1.msra.mxu0 0.0
        %543 = vmatprep.subr.mxu0 0.0
        %544 = vmatpush1.msra.mxu0 0.0
        %545 = vmatprep.subr.mxu0 0.0
        %546 = vmatpush1.msra.mxu0 %v496
        %547 = vmatprep.subr.mxu0 0.0
        %548 = vmatpush1.msra.mxu0 %v495
        %549 = vmatprep.subr.mxu0 0.0
        %550 = vmatpush2.msra.mxu0 0.0
        %551 = vmatprep.subr.mxu0 0.0
        %552 = vmatpush2.msra.mxu0 0.0
        %553 = vmatprep.subr.mxu0 0.0
        %554 = vmatpush2.msra.mxu0 0.0
        %555 = vmatprep.subr.mxu0 0.0
        %556 = vmatpush2.msra.mxu0 0.0
        %557 = vmatprep.subr.mxu0 0.0
        %558 = vmatpush2.msra.mxu0 0.0
        %559 = vmatprep.subr.mxu0 0.0
        %560 = vmatpush2.msra.mxu0 0.0
        %561 = vmatprep.subr.mxu0 0.0
        %562 = vmatpush2.msra.mxu0 0.0
        %563 = vmatprep.subr.mxu0 0.0
        %564 = vmatpush2.msra.mxu0 0.0
        %565 = vmatprep.subr.mxu0 0.0
        %566 = vmatpush2.msra.mxu0 0.0
        %567 = vmatprep.subr.mxu0 0.0
        %568 = vmatpush2.msra.mxu0 0.0
        %569 = vmatprep.subr.mxu0 0.0
        %570 = vmatpush2.msra.mxu0 0.0
        %571 = vmatprep.subr.mxu0 0.0
        %572 = vmatpush2.msra.mxu0 0.0
        %573 = vmatprep.subr.mxu0 0.0
        %574 = vmatpush2.msra.mxu0 0.0
        %575 = vmatprep.subr.mxu0 0.0
        %576 = vmatpush2.msra.mxu0 0.0
        %577 = vmatprep.subr.mxu0 0.0
        %578 = vmatpush2.msra.mxu0 0.0
        %579 = vmatprep.subr.mxu0 0.0
        %580 = vmatpush2.msra.mxu0 0.0
        %581 = vmatprep.mubr.f32.mxu0 0.0
        %582 = vmatmul.mubr.f32.gmra.mxu0 %v506
        %v583 = vpop.f32.mrf.mxu0
        %v584 = vadd.f32 %v502, %v583
        %v585 = vpop.f32.mrf.mxu0
        %586 = vmatprep.mubr.f32.mxu0 0.0
        %587 = vmatmul.mubr.f32.gmra.mxu0 %v509
        %v588 = vpop.f32.mrf.mxu0
        %v589 = vadd.f32 %v502, %v588
        %v590 = vpop.f32.mrf.mxu0
        %591 = vmatprep.mubr.f32.mxu0 0.0
        %592 = vmatmul.mubr.f32.gmra.mxu0 %v512
        %v593 = vpop.f32.mrf.mxu0
        %v594 = vadd.f32 %v502, %v593
        %v595 = vpop.f32.mrf.mxu0
        %596 = vmatprep.mubr.f32.mxu0 0.0
        %597 = vmatmul.mubr.f32.gmra.mxu0 %v515
        %v598 = vpop.f32.mrf.mxu0
        %v599 = vadd.f32 %v502, %v598
        %v600 = vpop.f32.mrf.mxu0
        %601 = vdwg.mxu0
        %v602 = vtanh.pop %v584
        %v603 = vtanh.pop %v589
        %v604 = vtanh.pop %v594
        %v605 = vtanh.pop %v599
        %v606 = vld [vmem:[%s488] sm:$0xff]
        %v607 = vld [vmem:[%s488 + $0x8] sm:$0xff]
        %v608 = vld [vmem:[%s488 + $0x10] sm:$0xff]
        %v609 = vld [vmem:[%s488 + $0x18] sm:$0xff]
        %v610 = vld [vmem:[%s4] sm:$0xff]
        %v611 = vld [vmem:[%s4 + $0x8] sm:$0xff]
        %v612 = vld [vmem:[%s4 + $0x10] sm:$0xff]
        %v613 = vld [vmem:[%s4 + $0x18] sm:$0xff]
        %vm614 = vcmask 261120
        %v616 = vsel %vm614, %v606, 0
        %v619 = vsel %vm614, %v607, 0
        %v622 = vsel %vm614, %v608, 0
        %v625 = vsel %vm614, %v609, 0
        %627 = vmatprep.subr.mxu0 0.0
        %628 = vmatpush1.msra.mxu0 0.0
        %629 = vmatprep.subr.mxu0 0.0
        %630 = vmatpush1.msra.mxu0 0.0
        %631 = vmatprep.subr.mxu0 0.0
        %632 = vmatpush1.msra.mxu0 0.0
        %633 = vmatprep.subr.mxu0 0.0
        %634 = vmatpush1.msra.mxu0 0.0
        %635 = vmatprep.subr.mxu0 0.0
        %636 = vmatpush1.msra.mxu0 0.0
        %637 = vmatprep.subr.mxu0 0.0
        %638 = vmatpush1.msra.mxu0 0.0
        %639 = vmatprep.subr.mxu0 0.0
        %640 = vmatpush1.msra.mxu0 0.0
        %641 = vmatprep.subr.mxu0 0.0
        %642 = vmatpush1.msra.mxu0 0.0
        %643 = vmatprep.subr.mxu0 0.0
        %644 = vmatpush1.msra.mxu0 0.0
        %645 = vmatprep.subr.mxu0 0.0
        %646 = vmatpush1.msra.mxu0 0.0
        %647 = vmatprep.subr.mxu0 0.0
        %648 = vmatpush1.msra.mxu0 0.0
        %649 = vmatprep.subr.mxu0 0.0
        %650 = vmatpush1.msra.mxu0 0.0
        %651 = vmatprep.subr.mxu0 0.0
        %652 = vmatpush1.msra.mxu0 %v613
        %653 = vmatprep.subr.mxu0 0.0
        %654 = vmatpush1.msra.mxu0 %v612
        %655 = vmatprep.subr.mxu0 0.0
        %656 = vmatpush1.msra.mxu0 %v611
        %657 = vmatprep.subr.mxu0 0.0
        %658 = vmatpush1.msra.mxu0 %v610
        %659 = vmatprep.subr.mxu0 0.0
        %660 = vmatpush2.msra.mxu0 0.0
        %661 = vmatprep.subr.mxu0 0.0
        %662 = vmatpush2.msra.mxu0 0.0
        %663 = vmatprep.subr.mxu0 0.0
        %664 = vmatpush2.msra.mxu0 0.0
        %665 = vmatprep.subr.mxu0 0.0
        %666 = vmatpush2.msra.mxu0 0.0
        %667 = vmatprep.subr.mxu0 0.0
        %668 = vmatpush2.msra.mxu0 0.0
        %669 = vmatprep.subr.mxu0 0.0
        %670 = vmatpush2.msra.mxu0 0.0
        %671 = vmatprep.subr.mxu0 0.0
        %672 = vmatpush2.msra.mxu0 0.0
        %673 = vmatprep.subr.mxu0 0.0
        %674 = vmatpush2.msra.mxu0 0.0
        %675 = vmatprep.subr.mxu0 0.0
        %676 = vmatpush2.msra.mxu0 0.0
        %677 = vmatprep.subr.mxu0 0.0
        %678 = vmatpush2.msra.mxu0 0.0
        %679 = vmatprep.subr.mxu0 0.0
        %680 = vmatpush2.msra.mxu0 0.0
        %681 = vmatprep.subr.mxu0 0.0
        %682 = vmatpush2.msra.mxu0 0.0
        %683 = vmatprep.subr.mxu0 0.0
        %684 = vmatpush2.msra.mxu0 0.0
        %685 = vmatprep.subr.mxu0 0.0
        %686 = vmatpush2.msra.mxu0 0.0
        %687 = vmatprep.subr.mxu0 0.0
        %688 = vmatpush2.msra.mxu0 0.0
        %689 = vmatprep.subr.mxu0 0.0
        %690 = vmatpush2.msra.mxu0 0.0
        %691 = vmatprep.mubr.f32.mxu0 0.0
        %692 = vmatmul.mubr.f32.gmra.mxu0 %v616
        %v693 = vpop.f32.mrf.mxu0
        %v694 = vadd.f32 0.0, %v693
        %v695 = vpop.f32.mrf.mxu0
        %696 = vmatprep.mubr.f32.mxu0 0.0
        %697 = vmatmul.mubr.f32.gmra.mxu0 %v619
        %v698 = vpop.f32.mrf.mxu0
        %v699 = vadd.f32 0.0, %v698
        %v700 = vpop.f32.mrf.mxu0
        %701 = vmatprep.mubr.f32.mxu0 0.0
        %702 = vmatmul.mubr.f32.gmra.mxu0 %v622
        %v703 = vpop.f32.mrf.mxu0
        %v704 = vadd.f32 0.0, %v703
        %v705 = vpop.f32.mrf.mxu0
        %706 = vmatprep.mubr.f32.mxu0 0.0
        %707 = vmatmul.mubr.f32.gmra.mxu0 %v625
        %v708 = vpop.f32.mrf.mxu0
        %v709 = vadd.f32 0.0, %v708
        %v710 = vpop.f32.mrf.mxu0
        %711 = vdwg.mxu0
        %vm712 = vcmask 64512
        %v713 = vsel %vm712, %v694, -inf
        %714 = vmax.xlane.f32.xlu0 %v713
        %v715 = vpop.xlane.xlu0 %714
        %v716 = vsel %vm712, %v699, -inf
        %717 = vmax.xlane.f32.xlu0 %v716
        %v718 = vpop.xlane.xlu0 %717
        %v719 = vsel %vm712, %v704, -inf
        %720 = vmax.xlane.f32.xlu0 %v719
        %v721 = vpop.xlane.xlu0 %720
        %v722 = vsel %vm712, %v709, -inf
        %723 = vmax.xlane.f32.xlu0 %v722
        %v724 = vpop.xlane.xlu0 %723
        %v725 = vsub.f32 %v694, %v715
        %v726 = vsub.f32 %v699, %v718
        %v727 = vsub.f32 %v704, %v721
        %v728 = vsub.f32 %v709, %v724
        %v729 = vmul.f32 %v725, 1.442695
        %v730 = vpow.pop %v729
        %v731 = vmul.f32 %v726, 1.442695
        %v732 = vpow.pop %v731
        %v733 = vmul.f32 %v727, 1.442695
        %v734 = vpow.pop %v733
        %v735 = vmul.f32 %v728, 1.442695
        %v736 = vpow.pop %v735
        %v737 = vsel %vm712, %v730, 0.0
        %738 = vadd.xlane.f32.xlu0 %v737
        %v739 = vpop.xlane.xlu0 %738
        %v740 = vsel %vm712, %v732, 0.0
        %741 = vadd.xlane.f32.xlu0 %v740
        %v742 = vpop.xlane.xlu0 %741
        %v743 = vsel %vm712, %v734, 0.0
        %744 = vadd.xlane.f32.xlu0 %v743
        %v745 = vpop.xlane.xlu0 %744
        %v746 = vsel %vm712, %v736, 0.0
        %747 = vadd.xlane.f32.xlu0 %v746
        %v748 = vpop.xlane.xlu0 %747
        %v749 = vrcp.pop %v739
        %v750 = vrcp.pop %v742
        %v751 = vrcp.pop %v745
        %v752 = vrcp.pop %v748
        %v753 = vmul.f32 %v730, %v749
        %v754 = vmul.f32 %v732, %v750
        %v755 = vmul.f32 %v734, %v751
        %v756 = vmul.f32 %v736, %v752
        %vm757 = vcmask 130112
        %v758 = vsel %vm757, %v694, -inf
        %759 = vmax.xlane.f32.xlu0 %v758
        %v760 = vpop.xlane.xlu0 %759
        %v761 = vsel %vm757, %v699, -inf
        %762 = vmax.xlane.f32.xlu0 %v761
        %v763 = vpop.xlane.xlu0 %762
        %v764 = vsel %vm757, %v704, -inf
        %765 = vmax.xlane.f32.xlu0 %v764
        %v766 = vpop.xlane.xlu0 %765
        %v767 = vsel %vm757, %v709, -inf
        %768 = vmax.xlane.f32.xlu0 %v767
        %v769 = vpop.xlane.xlu0 %768
        %v770 = vsub.f32 %v694, %v760
        %v771 = vsub.f32 %v699, %v763
        %v772 = vsub.f32 %v704, %v766
        %v773 = vsub.f32 %v709, %v769
        %v774 = vmul.f32 %v770, 1.442695
        %v775 = vpow.pop %v774
        %v776 = vmul.f32 %v771, 1.442695
        %v777 = vpow.pop %v776
        %v778 = vmul.f32 %v772, 1.442695
        %v779 = vpow.pop %v778
        %v780 = vmul.f32 %v773, 1.442695
        %v781 = vpow.pop %v780
        %786 = vrot.lane.b32.xlu0 %v775, 120
        %v787 = vpop.permute.xlu0 %786
        %788 = vrot.lane.b32.xlu0 %v777, 120
        %v789 = vpop.permute.xlu0 %788
        %790 = vrot.lane.b32.xlu0 %v779, 120
        %v791 = vpop.permute.xlu0 %790
        %792 = vrot.lane.b32.xlu0 %v781, 120
        %v793 = vpop.permute.xlu0 %792
        %v798 = vsel %vm712, %v787, 0.0
        %799 = vadd.xlane.f32.xlu0 %v798
        %v800 = vpop.xlane.xlu0 %799
        %v801 = vsel %vm712, %v789, 0.0
        %802 = vadd.xlane.f32.xlu0 %v801
        %v803 = vpop.xlane.xlu0 %802
        %v804 = vsel %vm712, %v791, 0.0
        %805 = vadd.xlane.f32.xlu0 %v804
        %v806 = vpop.xlane.xlu0 %805
        %v807 = vsel %vm712, %v793, 0.0
        %808 = vadd.xlane.f32.xlu0 %v807
        %v809 = vpop.xlane.xlu0 %808
        %v810 = vrcp.pop %v800
        %v811 = vrcp.pop %v803
        %v812 = vrcp.pop %v806
        %v813 = vrcp.pop %v809
        %v814 = vmul.f32 %v775, %v810
        %v815 = vmul.f32 %v777, %v811
        %v816 = vmul.f32 %v779, %v812
        %v817 = vmul.f32 %v781, %v813
        %vm818 = vcmask 195712
        %v819 = vsel %vm818, %v694, -inf
        %820 = vmax.xlane.f32.xlu0 %v819
        %v821 = vpop.xlane.xlu0 %820
        %v822 = vsel %vm818, %v699, -inf
        %823 = vmax.xlane.f32.xlu0 %v822
        %v824 = vpop.xlane.xlu0 %823
        %v825 = vsel %vm818, %v704, -inf
        %826 = vmax.xlane.f32.xlu0 %v825
        %v827 = vpop.xlane.xlu0 %826
        %v828 = vsel %vm818, %v709, -inf
        %829 = vmax.xlane.f32.xlu0 %v828
        %v830 = vpop.xlane.xlu0 %829
        %v831 = vsub.f32 %v694, %v821
        %v832 = vsub.f32 %v699, %v824
        %v833 = vsub.f32 %v704, %v827
        %v834 = vsub.f32 %v709, %v830
        %v835 = vmul.f32 %v831, 1.442695
        %v836 = vpow.pop %v835
        %v837 = vmul.f32 %v832, 1.442695
        %v838 = vpow.pop %v837
        %v839 = vmul.f32 %v833, 1.442695
        %v840 = vpow.pop %v839
        %v841 = vmul.f32 %v834, 1.442695
        %v842 = vpow.pop %v841
        %847 = vrot.lane.b32.xlu0 %v836, 112
        %v848 = vpop.permute.xlu0 %847
        %849 = vrot.lane.b32.xlu0 %v838, 112
        %v850 = vpop.permute.xlu0 %849
        %851 = vrot.lane.b32.xlu0 %v840, 112
        %v852 = vpop.permute.xlu0 %851
        %853 = vrot.lane.b32.xlu0 %v842, 112
        %v854 = vpop.permute.xlu0 %853
        %v859 = vsel %vm712, %v848, 0.0
        %860 = vadd.xlane.f32.xlu0 %v859
        %v861 = vpop.xlane.xlu0 %860
        %v862 = vsel %vm712, %v850, 0.0
        %863 = vadd.xlane.f32.xlu0 %v862
        %v864 = vpop.xlane.xlu0 %863
        %v865 = vsel %vm712, %v852, 0.0
        %866 = vadd.xlane.f32.xlu0 %v865
        %v867 = vpop.xlane.xlu0 %866
        %v868 = vsel %vm712, %v854, 0.0
        %869 = vadd.xlane.f32.xlu0 %v868
        %v870 = vpop.xlane.xlu0 %869
        %v871 = vrcp.pop %v861
        %v872 = vrcp.pop %v864
        %v873 = vrcp.pop %v867
        %v874 = vrcp.pop %v870
        %v875 = vmul.f32 %v836, %v871
        %v876 = vmul.f32 %v838, %v872
        %v877 = vmul.f32 %v840, %v873
        %v878 = vmul.f32 %v842, %v874
        %v879 = vsel %vm712, %v753, %v814
        %v880 = vsel %vm712, %v754, %v815
        %v881 = vsel %vm712, %v755, %v816
        %v882 = vsel %vm712, %v756, %v817
        %v883 = vsel %vm504, %v879, %v875
        %v884 = vsel %vm504, %v880, %v876
        %v885 = vsel %vm504, %v881, %v877
        %v886 = vsel %vm504, %v882, %v878
        %v887 = vld [vmem:[%s5] sm:$0xff]
        %v888 = vld [vmem:[%s5 + $0x8] sm:$0xff]
        %v889 = vld [vmem:[%s5 + $0x10] sm:$0xff]
        %vm890 = vcmask 195584
        %v892 = vsel %vm890, %v883, 0
        %v895 = vsel %vm890, %v884, 0
        %v898 = vsel %vm890, %v885, 0
        %v901 = vsel %vm890, %v886, 0
        %903 = vmatprep.subr.mxu0 0.0
        %904 = vmatpush1.msra.mxu0 0.0
        %905 = vmatprep.subr.mxu0 0.0
        %906 = vmatpush1.msra.mxu0 0.0
        %907 = vmatprep.subr.mxu0 0.0
        %908 = vmatpush1.msra.mxu0 0.0
        %909 = vmatprep.subr.mxu0 0.0
        %910 = vmatpush1.msra.mxu0 0.0
        %911 = vmatprep.subr.mxu0 0.0
        %912 = vmatpush1.msra.mxu0 0.0
        %913 = vmatprep.subr.mxu0 0.0
        %914 = vmatpush1.msra.mxu0 0.0
        %915 = vmatprep.subr.mxu0 0.0
        %916 = vmatpush1.msra.mxu0 0.0
        %917 = vmatprep.subr.mxu0 0.0
        %918 = vmatpush1.msra.mxu0 0.0
        %919 = vmatprep.subr.mxu0 0.0
        %920 = vmatpush1.msra.mxu0 0.0
        %921 = vmatprep.subr.mxu0 0.0
        %922 = vmatpush1.msra.mxu0 0.0
        %923 = vmatprep.subr.mxu0 0.0
        %924 = vmatpush1.msra.mxu0 0.0
        %925 = vmatprep.subr.mxu0 0.0
        %926 = vmatpush1.msra.mxu0 0.0
        %927 = vmatprep.subr.mxu0 0.0
        %928 = vmatpush1.msra.mxu0 0.0
        %929 = vmatprep.subr.mxu0 0.0
        %930 = vmatpush1.msra.mxu0 %v889
        %931 = vmatprep.subr.mxu0 0.0
        %932 = vmatpush1.msra.mxu0 %v888
        %933 = vmatprep.subr.mxu0 0.0
        %934 = vmatpush1.msra.mxu0 %v887
        %935 = vmatprep.subr.mxu0 0.0
        %936 = vmatpush2.msra.mxu0 0.0
        %937 = vmatprep.subr.mxu0 0.0
        %938 = vmatpush2.msra.mxu0 0.0
        %939 = vmatprep.subr.mxu0 0.0
        %940 = vmatpush2.msra.mxu0 0.0
        %941 = vmatprep.subr.mxu0 0.0
        %942 = vmatpush2.msra.mxu0 0.0
        %943 = vmatprep.subr.mxu0 0.0
        %944 = vmatpush2.msra.mxu0 0.0
        %945 = vmatprep.subr.mxu0 0.0
        %946 = vmatpush2.msra.mxu0 0.0
        %947 = vmatprep.subr.mxu0 0.0
        %948 = vmatpush2.msra.mxu0 0.0
        %949 = vmatprep.subr.mxu0 0.0
        %950 = vmatpush2.msra.mxu0 0.0
        %951 = vmatprep.subr.mxu0 0.0
        %952 = vmatpush2.msra.mxu0 0.0
        %953 = vmatprep.subr.mxu0 0.0
        %954 = vmatpush2.msra.mxu0 0.0
        %955 = vmatprep.subr.mxu0 0.0
        %956 = vmatpush2.msra.mxu0 0.0
        %957 = vmatprep.subr.mxu0 0.0
        %958 = vmatpush2.msra.mxu0 0.0
        %959 = vmatprep.subr.mxu0 0.0
        %960 = vmatpush2.msra.mxu0 0.0
        %961 = vmatprep.subr.mxu0 0.0
        %962 = vmatpush2.msra.mxu0 0.0
        %963 = vmatprep.subr.mxu0 0.0
        %964 = vmatpush2.msra.mxu0 0.0
        %965 = vmatprep.subr.mxu0 0.0
        %966 = vmatpush2.msra.mxu0 0.0
        %967 = vmatprep.mubr.f32.mxu0 0.0
        %968 = vmatmul.mubr.f32.gmra.mxu0 %v892
        %v969 = vpop.f32.mrf.mxu0
        %v970 = vadd.f32 0.0, %v969
        %v971 = vpop.f32.mrf.mxu0
        %972 = vmatprep.mubr.f32.mxu0 0.0
        %973 = vmatmul.mubr.f32.gmra.mxu0 %v895
        %v974 = vpop.f32.mrf.mxu0
        %v975 = vadd.f32 0.0, %v974
        %v976 = vpop.f32.mrf.mxu0
        %977 = vmatprep.mubr.f32.mxu0 0.0
        %978 = vmatmul.mubr.f32.gmra.mxu0 %v898
        %v979 = vpop.f32.mrf.mxu0
        %v980 = vadd.f32 0.0, %v979
        %v981 = vpop.f32.mrf.mxu0
        %982 = vmatprep.mubr.f32.mxu0 0.0
        %983 = vmatmul.mubr.f32.gmra.mxu0 %v901
        %v984 = vpop.f32.mrf.mxu0
        %v985 = vadd.f32 0.0, %v984
        %v986 = vpop.f32.mrf.mxu0
        %987 = vdwg.mxu0
        %v988 = vld [vmem:[%s6] sm:$0xff]
        %v989 = vld [vmem:[%s6 + $0x8] sm:$0xff]
        %v990 = vld [vmem:[%s6 + $0x10] sm:$0xff]
        %v991 = vld [vmem:[%s6 + $0x18] sm:$0xff]
        %v992 = vld [vmem:[%s6 + $0x20] sm:$0xff]
        %v993 = vld [vmem:[%s6 + $0x28] sm:$0xff]
        %v994 = vld [vmem:[%s6 + $0x30] sm:$0xff]
        %v995 = vld [vmem:[%s6 + $0x38] sm:$0xff]
        %v996 = vld [vmem:[%s7] sm:$0x1]
        %v998 = vlaneseq
        %v999 = vshrl.u32 %v998, 7
        %v1000 = vsub.s32 0, %v999
        %v1001 = vrot.slane %v996, %v1000
        %vm1003 = vcmask 523264
        %v1005 = vsel %vm1003, %v970, 0
        %v1008 = vsel %vm1003, %v975, 0
        %v1011 = vsel %vm1003, %v980, 0
        %v1014 = vsel %vm1003, %v985, 0
        %1016 = vmatprep.subr.mxu0 0.0
        %1017 = vmatpush1.msra.mxu0 0.0
        %1018 = vmatprep.subr.mxu0 0.0
        %1019 = vmatpush1.msra.mxu0 0.0
        %1020 = vmatprep.subr.mxu0 0.0
        %1021 = vmatpush1.msra.mxu0 0.0
        %1022 = vmatprep.subr.mxu0 0.0
        %1023 = vmatpush1.msra.mxu0 0.0
        %1024 = vmatprep.subr.mxu0 0.0
        %1025 = vmatpush1.msra.mxu0 0.0
        %1026 = vmatprep.subr.mxu0 0.0
        %1027 = vmatpush1.msra.mxu0 0.0
        %1028 = vmatprep.subr.mxu0 0.0
        %1029 = vmatpush1.msra.mxu0 0.0
        %1030 = vmatprep.subr.mxu0 0.0
        %1031 = vmatpush1.msra.mxu0 0.0
        %1032 = vmatprep.subr.mxu0 0.0
        %1033 = vmatpush1.msra.mxu0 %v995
        %1034 = vmatprep.subr.mxu0 0.0
        %1035 = vmatpush1.msra.mxu0 %v994
        %1036 = vmatprep.subr.mxu0 0.0
        %1037 = vmatpush1.msra.mxu0 %v993
        %1038 = vmatprep.subr.mxu0 0.0
        %1039 = vmatpush1.msra.mxu0 %v992
        %1040 = vmatprep.subr.mxu0 0.0
        %1041 = vmatpush1.msra.mxu0 %v991
        %1042 = vmatprep.subr.mxu0 0.0
        %1043 = vmatpush1.msra.mxu0 %v990
        %1044 = vmatprep.subr.mxu0 0.0
        %1045 = vmatpush1.msra.mxu0 %v989
        %1046 = vmatprep.subr.mxu0 0.0
        %1047 = vmatpush1.msra.mxu0 %v988
        %1048 = vmatprep.subr.mxu0 0.0
        %1049 = vmatpush2.msra.mxu0 0.0
        %1050 = vmatprep.subr.mxu0 0.0
        %1051 = vmatpush2.msra.mxu0 0.0
        %1052 = vmatprep.subr.mxu0 0.0
        %1053 = vmatpush2.msra.mxu0 0.0
        %1054 = vmatprep.subr.mxu0 0.0
        %1055 = vmatpush2.msra.mxu0 0.0
        %1056 = vmatprep.subr.mxu0 0.0
        %1057 = vmatpush2.msra.mxu0 0.0
        %1058 = vmatprep.subr.mxu0 0.0
        %1059 = vmatpush2.msra.mxu0 0.0
        %1060 = vmatprep.subr.mxu0 0.0
        %1061 = vmatpush2.msra.mxu0 0.0
        %1062 = vmatprep.subr.mxu0 0.0
        %1063 = vmatpush2.msra.mxu0 0.0
        %1064 = vmatprep.subr.mxu0 0.0
        %1065 = vmatpush2.msra.mxu0 0.0
        %1066 = vmatprep.subr.mxu0 0.0
        %1067 = vmatpush2.msra.mxu0 0.0
        %1068 = vmatprep.subr.mxu0 0.0
        %1069 = vmatpush2.msra.mxu0 0.0
        %1070 = vmatprep.subr.mxu0 0.0
        %1071 = vmatpush2.msra.mxu0 0.0
        %1072 = vmatprep.subr.mxu0 0.0
        %1073 = vmatpush2.msra.mxu0 0.0
        %1074 = vmatprep.subr.mxu0 0.0
        %1075 = vmatpush2.msra.mxu0 0.0
        %1076 = vmatprep.subr.mxu0 0.0
        %1077 = vmatpush2.msra.mxu0 0.0
        %1078 = vmatprep.subr.mxu0 0.0
        %1079 = vmatpush2.msra.mxu0 0.0
        %1080 = vmatprep.mubr.f32.mxu0 0.0
        %1081 = vmatmul.mubr.f32.gmra.mxu0 %v1005
        %v1082 = vpop.f32.mrf.mxu0
        %v1083 = vadd.f32 %v1001, %v1082
        %v1084 = vpop.f32.mrf.mxu0
        %1085 = vmatprep.mubr.f32.mxu0 0.0
        %1086 = vmatmul.mubr.f32.gmra.mxu0 %v1008
        %v1087 = vpop.f32.mrf.mxu0
        %v1088 = vadd.f32 %v1001, %v1087
        %v1089 = vpop.f32.mrf.mxu0
        %1090 = vmatprep.mubr.f32.mxu0 0.0
        %1091 = vmatmul.mubr.f32.gmra.mxu0 %v1011
        %v1092 = vpop.f32.mrf.mxu0
        %v1093 = vadd.f32 %v1001, %v1092
        %v1094 = vpop.f32.mrf.mxu0
        %1095 = vmatprep.mubr.f32.mxu0 0.0
        %1096 = vmatmul.mubr.f32.gmra.mxu0 %v1014
        %v1097 = vpop.f32.mrf.mxu0
        %v1098 = vadd.f32 %v1001, %v1097
        %v1099 = vpop.f32.mrf.mxu0
        %1100 = vdwg.mxu0
        %v1101 = vmax.f32 %v1083, 0.0
        %v1102 = vmax.f32 %v1088, 0.0
        %v1103 = vmax.f32 %v1093, 0.0
        %v1104 = vmax.f32 %v1098, 0.0
        %v1105 = vld [vmem:[%s8] sm:$0xff]
        %v1106 = vld [vmem:[%s8 + $0x8] sm:$0xff]
        %v1107 = vld [vmem:[%s8 + $0x10] sm:$0xff]
        %v1108 = vld [vmem:[%s8 + $0x18] sm:$0xff]
        %v1109 = vld [vmem:[%s8 + $0x20] sm:$0xff]
        %v1110 = vld [vmem:[%s8 + $0x28] sm:$0xff]
        %v1111 = vld [vmem:[%s8 + $0x30] sm:$0xff]
        %v1112 = vld [vmem:[%s8 + $0x38] sm:$0xff]
        %v1113 = vld [vmem:[%s9] sm:$0x1]
        %v1115 = vlaneseq
        %v1116 = vshrl.u32 %v1115, 7
        %v1117 = vsub.s32 0, %v1116
        %v1118 = vrot.slane %v1113, %v1117
        %v1121 = vsel %vm1003, %v1101, 0
        %v1124 = vsel %vm1003, %v1102, 0
        %v1127 = vsel %vm1003, %v1103, 0
        %v1130 = vsel %vm1003, %v1104, 0
        %1132 = vmatprep.subr.mxu0 0.0
        %1133 = vmatpush1.msra.mxu0 0.0
        %1134 = vmatprep.subr.mxu0 0.0
        %1135 = vmatpush1.msra.mxu0 0.0
        %1136 = vmatprep.subr.mxu0 0.0
        %1137 = vmatpush1.msra.mxu0 0.0
        %1138 = vmatprep.subr.mxu0 0.0
        %1139 = vmatpush1.msra.mxu0 0.0
        %1140 = vmatprep.subr.mxu0 0.0
        %1141 = vmatpush1.msra.mxu0 0.0
        %1142 = vmatprep.subr.mxu0 0.0
        %1143 = vmatpush1.msra.mxu0 0.0
        %1144 = vmatprep.subr.mxu0 0.0
        %1145 = vmatpush1.msra.mxu0 0.0
        %1146 = vmatprep.subr.mxu0 0.0
        %1147 = vmatpush1.msra.mxu0 0.0
        %1148 = vmatprep.subr.mxu0 0.0
        %1149 = vmatpush1.msra.mxu0 %v1112
        %1150 = vmatprep.subr.mxu0 0.0
        %1151 = vmatpush1.msra.mxu0 %v1111
        %1152 = vmatprep.subr.mxu0 0.0
        %1153 = vmatpush1.msra.mxu0 %v1110
        %1154 = vmatprep.subr.mxu0 0.0
        %1155 = vmatpush1.msra.mxu0 %v1109
        %1156 = vmatprep.subr.mxu0 0.0
        %1157 = vmatpush1.msra.mxu0 %v1108
        %1158 = vmatprep.subr.mxu0 0.0
        %1159 = vmatpush1.msra.mxu0 %v1107
        %1160 = vmatprep.subr.mxu0 0.0
        %1161 = vmatpush1.msra.mxu0 %v1106
        %1162 = vmatprep.subr.mxu0 0.0
        %1163 = vmatpush1.msra.mxu0 %v1105
        %1164 = vmatprep.subr.mxu0 0.0
        %1165 = vmatpush2.msra.mxu0 0.0
        %1166 = vmatprep.subr.mxu0 0.0
        %1167 = vmatpush2.msra.mxu0 0.0
        %1168 = vmatprep.subr.mxu0 0.0
        %1169 = vmatpush2.msra.mxu0 0.0
        %1170 = vmatprep.subr.mxu0 0.0
        %1171 = vmatpush2.msra.mxu0 0.0
        %1172 = vmatprep.subr.mxu0 0.0
        %1173 = vmatpush2.msra.mxu0 0.0
        %1174 = vmatprep.subr.mxu0 0.0
        %1175 = vmatpush2.msra.mxu0 0.0
        %1176 = vmatprep.subr.mxu0 0.0
        %1177 = vmatpush2.msra.mxu0 0.0
        %1178 = vmatprep.subr.mxu0 0.0
        %1179 = vmatpush2.msra.mxu0 0.0
        %1180 = vmatprep.subr.mxu0 0.0
        %1181 = vmatpush2.msra.mxu0 0.0
        %1182 = vmatprep.subr.mxu0 0.0
        %1183 = vmatpush2.msra.mxu0 0.0
        %1184 = vmatprep.subr.mxu0 0.0
        %1185 = vmatpush2.msra.mxu0 0.0
        %1186 = vmatprep.subr.mxu0 0.0
        %1187 = vmatpush2.msra.mxu0 0.0
        %1188 = vmatprep.subr.mxu0 0.0
        %1189 = vmatpush2.msra.mxu0 0.0
        %1190 = vmatprep.subr.mxu0 0.0
        %1191 = vmatpush2.msra.mxu0 0.0
        %1192 = vmatprep.subr.mxu0 0.0
        %1193 = vmatpush2.msra.mxu0 0.0
        %1194 = vmatprep.subr.mxu0 0.0
        %1195 = vmatpush2.msra.mxu0 0.0
        %1196 = vmatprep.mubr.f32.mxu0 0.0
        %1197 = vmatmul.mubr.f32.gmra.mxu0 %v1121
        %v1198 = vpop.f32.mrf.mxu0
        %v1199 = vadd.f32 %v1118, %v1198
        %v1200 = vpop.f32.mrf.mxu0
        %1201 = vmatprep.mubr.f32.mxu0 0.0
        %1202 = vmatmul.mubr.f32.gmra.mxu0 %v1124
        %v1203 = vpop.f32.mrf.mxu0
        %v1204 = vadd.f32 %v1118, %v1203
        %v1205 = vpop.f32.mrf.mxu0
        %1206 = vmatprep.mubr.f32.mxu0 0.0
        %1207 = vmatmul.mubr.f32.gmra.mxu0 %v1127
        %v1208 = vpop.f32.mrf.mxu0
        %v1209 = vadd.f32 %v1118, %v1208
        %v1210 = vpop.f32.mrf.mxu0
        %1211 = vmatprep.mubr.f32.mxu0 0.0
        %1212 = vmatmul.mubr.f32.gmra.mxu0 %v1130
        %v1213 = vpop.f32.mrf.mxu0
        %v1214 = vadd.f32 %v1118, %v1213
        %v1215 = vpop.f32.mrf.mxu0
        %1216 = vdwg.mxu0
        %v1217 = vmax.f32 %v1199, 0.0
        %v1218 = vmax.f32 %v1204, 0.0
        %v1219 = vmax.f32 %v1209, 0.0
        %v1220 = vmax.f32 %v1214, 0.0
        %v1221 = vld [vmem:[%s10] sm:$0xff]
        %v1222 = vld [vmem:[%s10 + $0x8] sm:$0xff]
        %v1223 = vld [vmem:[%s10 + $0x10] sm:$0xff]
        %v1224 = vld [vmem:[%s10 + $0x18] sm:$0xff]
        %v1225 = vld [vmem:[%s10 + $0x20] sm:$0xff]
        %v1226 = vld [vmem:[%s10 + $0x28] sm:$0xff]
        %v1227 = vld [vmem:[%s10 + $0x30] sm:$0xff]
        %v1228 = vld [vmem:[%s10 + $0x38] sm:$0xff]
        %v1229 = vld [vmem:[%s11] sm:$0x1]
        %v1231 = vlaneseq
        %v1232 = vshrl.u32 %v1231, 7
        %v1233 = vsub.s32 0, %v1232
        %v1234 = vrot.slane %v1229, %v1233
        %v1237 = vsel %vm1003, %v1217, 0
        %v1240 = vsel %vm1003, %v1218, 0
        %v1243 = vsel %vm1003, %v1219, 0
        %v1246 = vsel %vm1003, %v1220, 0
        %1248 = vmatprep.subr.mxu0 0.0
        %1249 = vmatpush1.msra.mxu0 0.0
        %1250 = vmatprep.subr.mxu0 0.0
        %1251 = vmatpush1.msra.mxu0 0.0
        %1252 = vmatprep.subr.mxu0 0.0
        %1253 = vmatpush1.msra.mxu0 0.0
        %1254 = vmatprep.subr.mxu0 0.0
        %1255 = vmatpush1.msra.mxu0 0.0
        %1256 = vmatprep.subr.mxu0 0.0
        %1257 = vmatpush1.msra.mxu0 0.0
        %1258 = vmatprep.subr.mxu0 0.0
        %1259 = vmatpush1.msra.mxu0 0.0
        %1260 = vmatprep.subr.mxu0 0.0
        %1261 = vmatpush1.msra.mxu0 0.0
        %1262 = vmatprep.subr.mxu0 0.0
        %1263 = vmatpush1.msra.mxu0 0.0
        %1264 = vmatprep.subr.mxu0 0.0
        %1265 = vmatpush1.msra.mxu0 %v1228
        %1266 = vmatprep.subr.mxu0 0.0
        %1267 = vmatpush1.msra.mxu0 %v1227
        %1268 = vmatprep.subr.mxu0 0.0
        %1269 = vmatpush1.msra.mxu0 %v1226
        %1270 = vmatprep.subr.mxu0 0.0
        %1271 = vmatpush1.msra.mxu0 %v1225
        %1272 = vmatprep.subr.mxu0 0.0
        %1273 = vmatpush1.msra.mxu0 %v1224
        %1274 = vmatprep.subr.mxu0 0.0
        %1275 = vmatpush1.msra.mxu0 %v1223
        %1276 = vmatprep.subr.mxu0 0.0
        %1277 = vmatpush1.msra.mxu0 %v1222
        %1278 = vmatprep.subr.mxu0 0.0
        %1279 = vmatpush1.msra.mxu0 %v1221
        %1280 = vmatprep.subr.mxu0 0.0
        %1281 = vmatpush2.msra.mxu0 0.0
        %1282 = vmatprep.subr.mxu0 0.0
        %1283 = vmatpush2.msra.mxu0 0.0
        %1284 = vmatprep.subr.mxu0 0.0
        %1285 = vmatpush2.msra.mxu0 0.0
        %1286 = vmatprep.subr.mxu0 0.0
        %1287 = vmatpush2.msra.mxu0 0.0
        %1288 = vmatprep.subr.mxu0 0.0
        %1289 = vmatpush2.msra.mxu0 0.0
        %1290 = vmatprep.subr.mxu0 0.0
        %1291 = vmatpush2.msra.mxu0 0.0
        %1292 = vmatprep.subr.mxu0 0.0
        %1293 = vmatpush2.msra.mxu0 0.0
        %1294 = vmatprep.subr.mxu0 0.0
        %1295 = vmatpush2.msra.mxu0 0.0
        %1296 = vmatprep.subr.mxu0 0.0
        %1297 = vmatpush2.msra.mxu0 0.0
        %1298 = vmatprep.subr.mxu0 0.0
        %1299 = vmatpush2.msra.mxu0 0.0
        %1300 = vmatprep.subr.mxu0 0.0
        %1301 = vmatpush2.msra.mxu0 0.0
        %1302 = vmatprep.subr.mxu0 0.0
        %1303 = vmatpush2.msra.mxu0 0.0
        %1304 = vmatprep.subr.mxu0 0.0
        %1305 = vmatpush2.msra.mxu0 0.0
        %1306 = vmatprep.subr.mxu0 0.0
        %1307 = vmatpush2.msra.mxu0 0.0
        %1308 = vmatprep.subr.mxu0 0.0
        %1309 = vmatpush2.msra.mxu0 0.0
        %1310 = vmatprep.subr.mxu0 0.0
        %1311 = vmatpush2.msra.mxu0 0.0
        %1312 = vmatprep.mubr.f32.mxu0 0.0
        %1313 = vmatmul.mubr.f32.gmra.mxu0 %v1237
        %v1314 = vpop.f32.mrf.mxu0
        %v1315 = vadd.f32 %v1234, %v1314
        %v1316 = vpop.f32.mrf.mxu0
        %1317 = vmatprep.mubr.f32.mxu0 0.0
        %1318 = vmatmul.mubr.f32.gmra.mxu0 %v1240
        %v1319 = vpop.f32.mrf.mxu0
        %v1320 = vadd.f32 %v1234, %v1319
        %v1321 = vpop.f32.mrf.mxu0
        %1322 = vmatprep.mubr.f32.mxu0 0.0
        %1323 = vmatmul.mubr.f32.gmra.mxu0 %v1243
        %v1324 = vpop.f32.mrf.mxu0
        %v1325 = vadd.f32 %v1234, %v1324
        %v1326 = vpop.f32.mrf.mxu0
        %1327 = vmatprep.mubr.f32.mxu0 0.0
        %1328 = vmatmul.mubr.f32.gmra.mxu0 %v1246
        %v1329 = vpop.f32.mrf.mxu0
        %v1330 = vadd.f32 %v1234, %v1329
        %v1331 = vpop.f32.mrf.mxu0
        %1332 = vdwg.mxu0
        %v1333 = vmax.f32 %v1315, 0.0
        %v1334 = vmax.f32 %v1320, 0.0
        %v1335 = vmax.f32 %v1325, 0.0
        %v1336 = vmax.f32 %v1330, 0.0
        %1341 = vrot.lane.b32.xlu0 %v1333, 32
        %v1342 = vpop.permute.xlu0 %1341
        %1343 = vrot.lane.b32.xlu0 %v1334, 32
        %v1344 = vpop.permute.xlu0 %1343
        %1345 = vrot.lane.b32.xlu0 %v1335, 32
        %v1346 = vpop.permute.xlu0 %1345
        %1347 = vrot.lane.b32.xlu0 %v1336, 32
        %v1348 = vpop.permute.xlu0 %1347
        %v1353 = vsel %vm614, %v602, %v1342
        %v1354 = vsel %vm614, %v603, %v1344
        %v1355 = vsel %vm614, %v604, %v1346
        %v1356 = vsel %vm614, %v605, %v1348
        %v1357 = vld [vmem:[%s12] sm:$0xff]
        %v1358 = vld [vmem:[%s12 + $0x8] sm:$0xff]
        %v1359 = vld [vmem:[%s12 + $0x10] sm:$0xff]
        %v1360 = vld [vmem:[%s12 + $0x18] sm:$0xff]
        %v1361 = vld [vmem:[%s12 + $0x20] sm:$0xff]
        %v1362 = vld [vmem:[%s12 + $0x28] sm:$0xff]
        %v1363 = vld [vmem:[%s12 + $0x30] sm:$0xff]
        %v1364 = vld [vmem:[%s12 + $0x38] sm:$0xff]
        %v1365 = vld [vmem:[%s12 + $0x40] sm:$0xff]
        %v1366 = vld [vmem:[%s12 + $0x48] sm:$0xff]
        %v1367 = vld [vmem:[%s12 + $0x50] sm:$0xff]
        %v1368 = vld [vmem:[%s12 + $0x58] sm:$0xff]
        %v1369 = vld [vmem:[%s13] sm:$0x1]
        %v1371 = vlaneseq
        %v1372 = vshrl.u32 %v1371, 7
        %v1373 = vsub.s32 0, %v1372
        %v1374 = vrot.slane %v1369, %v1373
        %vm1376 = vcmask 785408
        %v1378 = vsel %vm1376, %v1353, 0
        %v1381 = vsel %vm1376, %v1354, 0
        %v1384 = vsel %vm1376, %v1355, 0
        %v1387 = vsel %vm1376, %v1356, 0
        %1389 = vmatprep.subr.mxu0 0.0
        %1390 = vmatpush1.msra.mxu0 0.0
        %1391 = vmatprep.subr.mxu0 0.0
        %1392 = vmatpush1.msra.mxu0 0.0
        %1393 = vmatprep.subr.mxu0 0.0
        %1394 = vmatpush1.msra.mxu0 0.0
        %1395 = vmatprep.subr.mxu0 0.0
        %1396 = vmatpush1.msra.mxu0 0.0
        %1397 = vmatprep.subr.mxu0 0.0
        %1398 = vmatpush1.msra.mxu0 %v1368
        %1399 = vmatprep.subr.mxu0 0.0
        %1400 = vmatpush1.msra.mxu0 %v1367
        %1401 = vmatprep.subr.mxu0 0.0
        %1402 = vmatpush1.msra.mxu0 %v1366
        %1403 = vmatprep.subr.mxu0 0.0
        %1404 = vmatpush1.msra.mxu0 %v1365
        %1405 = vmatprep.subr.mxu0 0.0
        %1406 = vmatpush1.msra.mxu0 %v1364
        %1407 = vmatprep.subr.mxu0 0.0
        %1408 = vmatpush1.msra.mxu0 %v1363
        %1409 = vmatprep.subr.mxu0 0.0
        %1410 = vmatpush1.msra.mxu0 %v1362
        %1411 = vmatprep.subr.mxu0 0.0
        %1412 = vmatpush1.msra.mxu0 %v1361
        %1413 = vmatprep.subr.mxu0 0.0
        %1414 = vmatpush1.msra.mxu0 %v1360
        %1415 = vmatprep.subr.mxu0 0.0
        %1416 = vmatpush1.msra.mxu0 %v1359
        %1417 = vmatprep.subr.mxu0 0.0
        %1418 = vmatpush1.msra.mxu0 %v1358
        %1419 = vmatprep.subr.mxu0 0.0
        %1420 = vmatpush1.msra.mxu0 %v1357
        %1421 = vmatprep.subr.mxu0 0.0
        %1422 = vmatpush2.msra.mxu0 0.0
        %1423 = vmatprep.subr.mxu0 0.0
        %1424 = vmatpush2.msra.mxu0 0.0
        %1425 = vmatprep.subr.mxu0 0.0
        %1426 = vmatpush2.msra.mxu0 0.0
        %1427 = vmatprep.subr.mxu0 0.0
        %1428 = vmatpush2.msra.mxu0 0.0
        %1429 = vmatprep.subr.mxu0 0.0
        %1430 = vmatpush2.msra.mxu0 0.0
        %1431 = vmatprep.subr.mxu0 0.0
        %1432 = vmatpush2.msra.mxu0 0.0
        %1433 = vmatprep.subr.mxu0 0.0
        %1434 = vmatpush2.msra.mxu0 0.0
        %1435 = vmatprep.subr.mxu0 0.0
        %1436 = vmatpush2.msra.mxu0 0.0
        %1437 = vmatprep.subr.mxu0 0.0
        %1438 = vmatpush2.msra.mxu0 0.0
        %1439 = vmatprep.subr.mxu0 0.0
        %1440 = vmatpush2.msra.mxu0 0.0
        %1441 = vmatprep.subr.mxu0 0.0
        %1442 = vmatpush2.msra.mxu0 0.0
        %1443 = vmatprep.subr.mxu0 0.0
        %1444 = vmatpush2.msra.mxu0 0.0
        %1445 = vmatprep.subr.mxu0 0.0
        %1446 = vmatpush2.msra.mxu0 0.0
        %1447 = vmatprep.subr.mxu0 0.0
        %1448 = vmatpush2.msra.mxu0 0.0
        %1449 = vmatprep.subr.mxu0 0.0
        %1450 = vmatpush2.msra.mxu0 0.0
        %1451 = vmatprep.subr.mxu0 0.0
        %1452 = vmatpush2.msra.mxu0 0.0
        %1453 = vmatprep.mubr.f32.mxu0 0.0
        %1454 = vmatmul.mubr.f32.gmra.mxu0 %v1378
        %v1455 = vpop.f32.mrf.mxu0
        %v1456 = vadd.f32 %v1374, %v1455
        %v1457 = vpop.f32.mrf.mxu0
        %1458 = vmatprep.mubr.f32.mxu0 0.0
        %1459 = vmatmul.mubr.f32.gmra.mxu0 %v1381
        %v1460 = vpop.f32.mrf.mxu0
        %v1461 = vadd.f32 %v1374, %v1460
        %v1462 = vpop.f32.mrf.mxu0
        %1463 = vmatprep.mubr.f32.mxu0 0.0
        %1464 = vmatmul.mubr.f32.gmra.mxu0 %v1384
        %v1465 = vpop.f32.mrf.mxu0
        %v1466 = vadd.f32 %v1374, %v1465
        %v1467 = vpop.f32.mrf.mxu0
        %1468 = vmatprep.mubr.f32.mxu0 0.0
        %1469 = vmatmul.mubr.f32.gmra.mxu0 %v1387
        %v1470 = vpop.f32.mrf.mxu0
        %v1471 = vadd.f32 %v1374, %v1470
        %v1472 = vpop.f32.mrf.mxu0
        %1473 = vdwg.mxu0
        %v1474 = vmax.f32 %v1456, 0.0
        %v1475 = vmax.f32 %v1461, 0.0
        %v1476 = vmax.f32 %v1466, 0.0
        %v1477 = vmax.f32 %v1471, 0.0
        %1478 = vst [vmem:[%s477] sm:$0xff] %v1474
        %1479 = vst [vmem:[%s477 + $0x8] sm:$0xff] %v1475
        %1480 = vst [vmem:[%s477 + $0x10] sm:$0xff] %v1476
        %1481 = vst [vmem:[%s477 + $0x18] sm:$0xff] %v1477
        %s1482 = sand.u32 %s340, 1
        %s1483 = scalar_lea.sflag [#allocation3], %s1482
        %s1484 = sand.u32 %s340, 1
        %s1485 = smul.addr %s1484, 32
        %s1486 = scalar_lea.vmem [#allocation2], %s1485
        // Predicated region
        $region77: #{tpu_custom_call.1} parent=75 // pred_check
          %p1487 = pneg %p350
        $region78: #{tpu_custom_call.1} parent=75 // pred_check_branch
          %1489 = sbr.rel (%p1487) target = $region80
        $region79: #{tpu_custom_call.1} parent=75 // pred_region
          %s1490 = smul.u32 4, %s28
          %s1492 = ssub.s32 512, 512
          %1493 = vsyncadd %s1483, %s1492
          %s1494 = smul.addr %s1490, 128
          %s1495 = scalar_lea.hbm %s14, %s1494
          %s1496 = sshll.u32 %s1486, 4
          %s1497 = int_to_ptr.vmem [resolvable:$true] %s1496
          %1502 = dma.vmem_to_hbm [thread:$0]  %s1497, 512, %s1495, %s1483, 128, 128, 8
        $region80: #{tpu_custom_call.1} parent=75 // pred_fallthru
          _
      $region76: #{tpu_custom_call.1} parent=5 // pred_fallthru
        _
      %p1503 = scmp.le.s32.totalorder 2, %s23
      // Predicated region
      $region81: #{tpu_custom_call.1} parent=5 // pred_check
        %p1504 = pneg %p1503
      $region82: #{tpu_custom_call.1} parent=5 // pred_check_branch
        %1506 = sbr.rel (%p1504) target = $region84
      $region83: #{tpu_custom_call.1} parent=5 // pred_region
        %s1507 = ssub.s32 %s23, 2
        // Predicated region
        $region85: #{tpu_custom_call.1} parent=83 // pred_check
          %p1508 = pneg %p356
        $region86: #{tpu_custom_call.1} parent=83 // pred_check_branch
          %1510 = sbr.rel (%p1508) target = $region88
        $region87: #{tpu_custom_call.1} parent=83 // pred_region
          %s1511 = sand.u32 %s341, 1
          %s1512 = scalar_lea.sflag [#allocation3], %s1511
          %s1513 = sand.u32 %s341, 1
          %s1514 = smul.addr %s1513, 32
          %s1515 = scalar_lea.vmem [#allocation2], %s1514
          %1516 = dma.done %s1512, 512
        $region88: #{tpu_custom_call.1} parent=83 // pred_fallthru
          _
      $region84: #{tpu_custom_call.1} parent=5 // pred_fallthru
        _
    $region6: #{tpu_custom_call.1} parent=1 // loop_footer
      %s27 = sadd.s32 1, %s23
    $region7: #{tpu_custom_call.1} parent=1 // loop_footer_branch
      %22 = sbr.rel target = $region3
    $region8: #{tpu_custom_call.1} parent=1 // loop_exit
      _
    %1517 = vsyncpa [#allocation3], 1
    %s1518 = scalar_lea.sflag [#allocation3], 1
    %1519 = vsyncpa %s1518, 1

</llo_original>
